<compile_context>
chip_gen: v6e
topology: v6e:2x2x1
jax: 0.10.0
libtpu: 0.0.40
codegen_flags: <defaults>
</compile_context>

<pallas_src>
import jax
import jax.numpy as jnp
from jax.experimental import pallas as pl
from jax.experimental.pallas import tpu as pltpu


def crelu_forward(x_nchw, weight, gamma, beta, running_mean, running_var,
                  *, stride, padding, eps=1e-5,
                  compute_dtype=jnp.bfloat16, out_dtype=jnp.bfloat16):
    """Fused conv2d(bias=False) -> eval BatchNorm2d -> cat([y, -y], 1) -> ReLU."""
    N, C, H, W = x_nchw.shape
    Cout, Cin, KH, KW = weight.shape
    assert Cin == C
    s = int(stride)
    p = int(padding)
    OH = (H + 2 * p - KH) // s + 1
    OW = (W + 2 * p - KW) // s + 1

    # Space-to-depth geometry: the kernel always sees a stride-1 problem.
    KHs = -(-KH // s)                   # effective kernel height after s2d
    KWs = -(-KW // s)
    KK = KHs * KWs
    CE = s * s * C                      # expanded channels
    Hs = -(-(H + 2 * p) // s)           # s2d plane height / width
    Ws = -(-(W + 2 * p) // s)
    # Every valid output position stays inside the s2d planes for all kernel offsets.
    assert OW <= Ws - KWs + 1 and OH <= Hs - KHs + 1

    # ---- fold eval-mode BatchNorm into the conv weights + a per-channel bias ----
    scale = gamma.astype(jnp.float32) * jax.lax.rsqrt(running_var.astype(jnp.float32) + eps)
    bias = (beta.astype(jnp.float32) - running_mean.astype(jnp.float32) * scale)
    bias = bias.reshape(Cout, 1)                                        # (Cout, 1) f32
    w_f = weight.astype(jnp.float32) * scale[:, None, None, None]       # (Cout, C, KH, KW)

    # ---- regroup weights for space-to-depth: wg[dh*KWs+dw, co, (r*s+t)*C + c] ----
    w_pad = jnp.pad(w_f, ((0, 0), (0, 0), (0, KHs * s - KH), (0, KWs * s - KW)))
    wg = w_pad.reshape(Cout, C, KHs, s, KWs, s)
    wg = wg.transpose(2, 4, 0, 3, 5, 1).reshape(KK, Cout, CE).astype(compute_dtype)

    # ---- input: cast to bf16 BEFORE padding; one pad pass; space-to-depth ----
    xb = x_nchw.astype(compute_dtype)
    x_pad = jnp.pad(xb, ((0, 0), (0, 0), (p, Hs * s - H - p), (p, Ws * s - W - p)))
    xs = x_pad.reshape(N, C, Hs, s, Ws, s).transpose(0, 3, 5, 1, 2, 4)
    xs = xs.reshape(N, CE, Hs, Ws)                                      # ce = (r*s+t)*C + c

    # ---- choose the output-row tile TOH against physical VMEM; keep >= 2 grid points ----
    try:
        phys_vmem = int(pltpu.get_tpu_info().vmem_capacity_bytes)
    except Exception:
        phys_vmem = 64 * 1024 * 1024        # v7x lower bound
    in_b = jnp.dtype(compute_dtype).itemsize
    out_b = jnp.dtype(out_dtype).itemsize

    def vmem_est(toh):
        lin = (toh + KHs) * Ws
        tq = toh * Ws
        return (2 * CE * lin * in_b          # double-buffered input window
                + 2 * KK * Cout * CE * in_b  # weights (resident)
                + 2 * 2 * Cout * tq * out_b  # double-buffered output tile
                + 4 * Cout * tq              # f32 accumulator
                + 4 * Cout * lin             # f32 product (product-shift path)
                + 2 * CE * tq                # shifted rhs slice (rhs-shift path)
                + (1 << 20))                 # headroom

    TOH = max(OH, 1)
    while TOH > 1 and vmem_est(TOH) > phys_vmem // 3:
        TOH = -(-TOH // 2)
    if N * (-(-OH // TOH)) < 2 and OH > 1:   # v7x: 2 TensorCores want >= 2 grid points
        TOH = -(-OH // 2)
    R = -(-OH // TOH)
    OHp = R * TOH
    IN_ROWS = TOH + KHs                      # (KHs-1) halo rows + 1 row of slack so the
    LIN = IN_ROWS * Ws                       # flat-window column overrun stays in bounds
    TQ = TOH * Ws

    vmem_limit = int(min(phys_vmem * 3 // 4, max(2 * vmem_est(TOH), 32 * 1024 * 1024)))

    # ---- overlapping, flattened row windows: (N, R, CE, LIN) ----
    rows = jnp.arange(R)[:, None] * TOH + jnp.arange(IN_ROWS)[None, :]  # (R, IN_ROWS)
    rows = jnp.minimum(rows, Hs - 1)         # clamped rows only feed discarded outputs
    x_tiles = jnp.take(xs, rows.reshape(-1), axis=2)                    # (N, CE, R*IN_ROWS, Ws)
    x_tiles = x_tiles.reshape(N, CE, R, IN_ROWS, Ws).transpose(0, 2, 1, 3, 4)
    x_tiles = x_tiles.reshape(N, R, CE, LIN)

    # ---- fused kernel: KK shifted MXU matmuls + BN shift + CReLU per row tile ----
    def kernel(x_ref, w_ref, b_ref, o_ref):
        acc = jnp.zeros((Cout, TQ), jnp.float32)
        if Cout <= CE:
            # Lane-shift the (Cout, .) product instead of the (CE, .) window:
            # fewer relayout rows per kernel offset.
            xwin = x_ref[...]
            for k in range(KK):
                off = (k // KWs) * Ws + (k % KWs)
                prod = jnp.dot(w_ref[k], xwin, preferred_element_type=jnp.float32)
                acc = acc + prod[:, off:off + TQ]
        else:
            for k in range(KK):
                off = (k // KWs) * Ws + (k % KWs)
                acc = acc + jnp.dot(w_ref[k], x_ref[:, off:off + TQ],
                                    preferred_element_type=jnp.float32)
        bn = acc + b_ref[...]                 # BN shift (scale already folded into w)
        pos = jnp.maximum(bn, 0.0)            # ReLU(bn), f32 epilogue (v5e-safe)
        o_ref[:Cout, :] = pos.astype(o_ref.dtype)
        o_ref[Cout:, :] = (pos - bn).astype(o_ref.dtype)   # ReLU(-bn) without a 2nd max

    cost = pl.CostEstimate(
        flops=2 * N * R * KK * Cout * CE * TQ,
        transcendentals=0,
        bytes_accessed=(x_tiles.size * in_b + wg.size * in_b + bias.size * 4
                        + N * R * 2 * Cout * TQ * out_b),
    )

    out = pl.pallas_call(
        kernel,
        out_shape=jax.ShapeDtypeStruct((N, R, 2 * Cout, TQ), out_dtype),
        grid_spec=pltpu.PrefetchScalarGridSpec(
            num_scalar_prefetch=0,
            grid=(N, R),
            in_specs=[
                pl.BlockSpec((None, None, CE, LIN), lambda n, r: (n, r, 0, 0)),
                pl.BlockSpec((KK, Cout, CE), lambda n, r: (0, 0, 0)),
                pl.BlockSpec((Cout, 1), lambda n, r: (0, 0)),
            ],
            out_specs=pl.BlockSpec((None, None, 2 * Cout, TQ), lambda n, r: (n, r, 0, 0)),
        ),
        compiler_params=pltpu.CompilerParams(
            dimension_semantics=("parallel", "parallel"),
            vmem_limit_bytes=vmem_limit),
        cost_estimate=cost,
    )(x_tiles, wg, bias)

    # (N, R, 2Cout, TOH*Ws) -> NCHW; drop the garbage rows/columns of the padded tiles.
    out = out.reshape(N, R, 2 * Cout, TOH, Ws).transpose(0, 2, 1, 3, 4)
    out = out.reshape(N, 2 * Cout, OHp, Ws)[:, :, :OH, :OW]
    return out


def _reference(x, weight, gamma, beta, running_mean, running_var, *, stride, padding,
               eps=1e-5):
    conv = jax.lax.conv_general_dilated(
        x, weight, window_strides=(stride, stride),
        padding=[(padding, padding), (padding, padding)],
        dimension_numbers=("NCHW", "OIHW", "NCHW"))
    bn = (conv - running_mean[None, :, None, None]) * jax.lax.rsqrt(
        running_var[None, :, None, None] + eps)
    bn = bn * gamma[None, :, None, None] + beta[None, :, None, None]
    return jnp.maximum(jnp.concatenate([bn, -bn], axis=1), 0.0)


if __name__ == "__main__":
    key = jax.random.PRNGKey(0)

    # (N, Cin, H, W, Cout, k, stride, padding): a stride-1 3x3 case and a small stride-2
    # 5x5 case mirroring the CRelu configuration actually used by FaceBoxes.
    configs = [
        (2, 4, 16, 16, 8, 3, 1, 1),
        (1, 8, 12, 12, 8, 5, 2, 2),
    ]
    for cfg in configs:
        N, Cin, H, W, Cout, ks, stride, padding = cfg
        key, k1, k2, k3, k4, k5, k6 = jax.random.split(key, 7)
        x = jax.random.normal(k1, (N, Cin, H, W), dtype=jnp.float32)
        weight = jax.random.normal(k2, (Cout, Cin, ks, ks), dtype=jnp.float32) * 0.1
        gamma = jax.random.uniform(k3, (Cout,), minval=0.5, maxval=1.5, dtype=jnp.float32)
        beta = jax.random.normal(k4, (Cout,), dtype=jnp.float32) * 0.1
        running_mean = jax.random.normal(k5, (Cout,), dtype=jnp.float32) * 0.1
        running_var = jax.random.uniform(k6, (Cout,), minval=0.5, maxval=1.5,
                                         dtype=jnp.float32)

        out = crelu_forward(x, weight, gamma, beta, running_mean, running_var,
                            stride=stride, padding=padding)
        out = jax.block_until_ready(out).astype(jnp.float32)

        ref = _reference(x, weight, gamma, beta, running_mean, running_var,
                         stride=stride, padding=padding)
        assert out.shape == ref.shape, (out.shape, ref.shape)
        err = jnp.max(jnp.abs(out - ref))
        # bf16 matmul inputs + bf16 output vs. an f32 reference.
        assert jnp.allclose(out, ref, atol=5e-2, rtol=5e-2), \
            f"cfg={cfg} max abs err={err}"
    print("KERNEL_OK")
</pallas_src>

<mosaic_0001>
module attributes {stable_mosaic.version = 11 : i64} {
  func.func @kernel(%arg0: i32, %arg1: i32, %arg2: memref<1x1x4x342xbf16, #tpu.memory_space<vmem>>, %arg3: memref<9x8x4xbf16, #tpu.memory_space<vmem>>, %arg4: memref<8x1xf32, #tpu.memory_space<vmem>>, %arg5: memref<1x1x16x288xbf16, #tpu.memory_space<vmem>>) attributes {dimension_semantics = [#tpu.dimension_semantics<parallel>, #tpu.dimension_semantics<parallel>], iteration_bounds = array<i64: 2, 1>, scalar_prefetch = 0 : i64, scratch_operands = 0 : i64, tpu.core_type = #tpu.core_type<tc>, window_params = [{transform_indices = @transform_0, window_bounds = array<i64: 1, 1, 4, 342>}, {pipeline_mode = #tpu.pipeline_mode<synchronous>, transform_indices = @transform_1, window_bounds = array<i64: 9, 8, 4>}, {pipeline_mode = #tpu.pipeline_mode<synchronous>, transform_indices = @transform_2, window_bounds = array<i64: 8, 1>}, {transform_indices = @transform_3, window_bounds = array<i64: 1, 1, 16, 288>}]} {
    %cst = arith.constant 0.000000e+00 : f32
    %0 = vector.broadcast %cst : f32 to vector<8x288xf32>
    %c0 = arith.constant 0 : index
    %c0_0 = arith.constant 0 : index
    %c0_1 = arith.constant 0 : index
    %1 = vector.load %arg3[%c0, %c0_0, %c0_1] : memref<9x8x4xbf16, #tpu.memory_space<vmem>>, vector<1x8x4xbf16>
    %2 = vector.shape_cast %1 : vector<1x8x4xbf16> to vector<8x4xbf16>
    %c0_2 = arith.constant 0 : index
    %c0_3 = arith.constant 0 : index
    %c0_4 = arith.constant 0 : index
    %c0_5 = arith.constant 0 : index
    %3 = vector.load %arg2[%c0_2, %c0_3, %c0_4, %c0_5] : memref<1x1x4x342xbf16, #tpu.memory_space<vmem>>, vector<1x1x4x288xbf16>
    %4 = vector.shape_cast %3 : vector<1x1x4x288xbf16> to vector<4x288xbf16>
    %cst_6 = arith.constant dense<0.000000e+00> : vector<8x288xf32>
    %5 = tpu.matmul %2, %4, %cst_6 {dimension_numbers = #tpu.dot_dimension_numbers<[1], [0], [0], [1], [0, 0, 1, 1], [], []>} : vector<8x4xbf16>, vector<4x288xbf16>, vector<8x288xf32> -> vector<8x288xf32>
    %6 = arith.addf %0, %5 : vector<8x288xf32>
    %c1 = arith.constant 1 : index
    %c0_7 = arith.constant 0 : index
    %c0_8 = arith.constant 0 : index
    %7 = vector.load %arg3[%c1, %c0_7, %c0_8] : memref<9x8x4xbf16, #tpu.memory_space<vmem>>, vector<1x8x4xbf16>
    %8 = vector.shape_cast %7 : vector<1x8x4xbf16> to vector<8x4xbf16>
    %c0_9 = arith.constant 0 : index
    %c0_10 = arith.constant 0 : index
    %c0_11 = arith.constant 0 : index
    %c1_12 = arith.constant 1 : index
    %9 = vector.load %arg2[%c0_9, %c0_10, %c0_11, %c1_12] : memref<1x1x4x342xbf16, #tpu.memory_space<vmem>>, vector<1x1x4x288xbf16>
    %10 = vector.shape_cast %9 : vector<1x1x4x288xbf16> to vector<4x288xbf16>
    %cst_13 = arith.constant dense<0.000000e+00> : vector<8x288xf32>
    %11 = tpu.matmul %8, %10, %cst_13 {dimension_numbers = #tpu.dot_dimension_numbers<[1], [0], [0], [1], [0, 0, 1, 1], [], []>} : vector<8x4xbf16>, vector<4x288xbf16>, vector<8x288xf32> -> vector<8x288xf32>
    %12 = arith.addf %6, %11 : vector<8x288xf32>
    %c2 = arith.constant 2 : index
    %c0_14 = arith.constant 0 : index
    %c0_15 = arith.constant 0 : index
    %13 = vector.load %arg3[%c2, %c0_14, %c0_15] : memref<9x8x4xbf16, #tpu.memory_space<vmem>>, vector<1x8x4xbf16>
    %14 = vector.shape_cast %13 : vector<1x8x4xbf16> to vector<8x4xbf16>
    %c0_16 = arith.constant 0 : index
    %c0_17 = arith.constant 0 : index
    %c0_18 = arith.constant 0 : index
    %c2_19 = arith.constant 2 : index
    %15 = vector.load %arg2[%c0_16, %c0_17, %c0_18, %c2_19] : memref<1x1x4x342xbf16, #tpu.memory_space<vmem>>, vector<1x1x4x288xbf16>
    %16 = vector.shape_cast %15 : vector<1x1x4x288xbf16> to vector<4x288xbf16>
    %cst_20 = arith.constant dense<0.000000e+00> : vector<8x288xf32>
    %17 = tpu.matmul %14, %16, %cst_20 {dimension_numbers = #tpu.dot_dimension_numbers<[1], [0], [0], [1], [0, 0, 1, 1], [], []>} : vector<8x4xbf16>, vector<4x288xbf16>, vector<8x288xf32> -> vector<8x288xf32>
    %18 = arith.addf %12, %17 : vector<8x288xf32>
    %c3 = arith.constant 3 : index
    %c0_21 = arith.constant 0 : index
    %c0_22 = arith.constant 0 : index
    %19 = vector.load %arg3[%c3, %c0_21, %c0_22] : memref<9x8x4xbf16, #tpu.memory_space<vmem>>, vector<1x8x4xbf16>
    %20 = vector.shape_cast %19 : vector<1x8x4xbf16> to vector<8x4xbf16>
    %c0_23 = arith.constant 0 : index
    %c0_24 = arith.constant 0 : index
    %c0_25 = arith.constant 0 : index
    %c18 = arith.constant 18 : index
    %21 = vector.load %arg2[%c0_23, %c0_24, %c0_25, %c18] : memref<1x1x4x342xbf16, #tpu.memory_space<vmem>>, vector<1x1x4x288xbf16>
    %22 = vector.shape_cast %21 : vector<1x1x4x288xbf16> to vector<4x288xbf16>
    %cst_26 = arith.constant dense<0.000000e+00> : vector<8x288xf32>
    %23 = tpu.matmul %20, %22, %cst_26 {dimension_numbers = #tpu.dot_dimension_numbers<[1], [0], [0], [1], [0, 0, 1, 1], [], []>} : vector<8x4xbf16>, vector<4x288xbf16>, vector<8x288xf32> -> vector<8x288xf32>
    %24 = arith.addf %18, %23 : vector<8x288xf32>
    %c4 = arith.constant 4 : index
    %c0_27 = arith.constant 0 : index
    %c0_28 = arith.constant 0 : index
    %25 = vector.load %arg3[%c4, %c0_27, %c0_28] : memref<9x8x4xbf16, #tpu.memory_space<vmem>>, vector<1x8x4xbf16>
    %26 = vector.shape_cast %25 : vector<1x8x4xbf16> to vector<8x4xbf16>
    %c0_29 = arith.constant 0 : index
    %c0_30 = arith.constant 0 : index
    %c0_31 = arith.constant 0 : index
    %c19 = arith.constant 19 : index
    %27 = vector.load %arg2[%c0_29, %c0_30, %c0_31, %c19] : memref<1x1x4x342xbf16, #tpu.memory_space<vmem>>, vector<1x1x4x288xbf16>
    %28 = vector.shape_cast %27 : vector<1x1x4x288xbf16> to vector<4x288xbf16>
    %cst_32 = arith.constant dense<0.000000e+00> : vector<8x288xf32>
    %29 = tpu.matmul %26, %28, %cst_32 {dimension_numbers = #tpu.dot_dimension_numbers<[1], [0], [0], [1], [0, 0, 1, 1], [], []>} : vector<8x4xbf16>, vector<4x288xbf16>, vector<8x288xf32> -> vector<8x288xf32>
    %30 = arith.addf %24, %29 : vector<8x288xf32>
    %c5 = arith.constant 5 : index
    %c0_33 = arith.constant 0 : index
    %c0_34 = arith.constant 0 : index
    %31 = vector.load %arg3[%c5, %c0_33, %c0_34] : memref<9x8x4xbf16, #tpu.memory_space<vmem>>, vector<1x8x4xbf16>
    %32 = vector.shape_cast %31 : vector<1x8x4xbf16> to vector<8x4xbf16>
    %c0_35 = arith.constant 0 : index
    %c0_36 = arith.constant 0 : index
    %c0_37 = arith.constant 0 : index
    %c20 = arith.constant 20 : index
    %33 = vector.load %arg2[%c0_35, %c0_36, %c0_37, %c20] : memref<1x1x4x342xbf16, #tpu.memory_space<vmem>>, vector<1x1x4x288xbf16>
    %34 = vector.shape_cast %33 : vector<1x1x4x288xbf16> to vector<4x288xbf16>
    %cst_38 = arith.constant dense<0.000000e+00> : vector<8x288xf32>
    %35 = tpu.matmul %32, %34, %cst_38 {dimension_numbers = #tpu.dot_dimension_numbers<[1], [0], [0], [1], [0, 0, 1, 1], [], []>} : vector<8x4xbf16>, vector<4x288xbf16>, vector<8x288xf32> -> vector<8x288xf32>
    %36 = arith.addf %30, %35 : vector<8x288xf32>
    %c6 = arith.constant 6 : index
    %c0_39 = arith.constant 0 : index
    %c0_40 = arith.constant 0 : index
    %37 = vector.load %arg3[%c6, %c0_39, %c0_40] : memref<9x8x4xbf16, #tpu.memory_space<vmem>>, vector<1x8x4xbf16>
    %38 = vector.shape_cast %37 : vector<1x8x4xbf16> to vector<8x4xbf16>
    %c0_41 = arith.constant 0 : index
    %c0_42 = arith.constant 0 : index
    %c0_43 = arith.constant 0 : index
    %c36 = arith.constant 36 : index
    %39 = vector.load %arg2[%c0_41, %c0_42, %c0_43, %c36] : memref<1x1x4x342xbf16, #tpu.memory_space<vmem>>, vector<1x1x4x288xbf16>
    %40 = vector.shape_cast %39 : vector<1x1x4x288xbf16> to vector<4x288xbf16>
    %cst_44 = arith.constant dense<0.000000e+00> : vector<8x288xf32>
    %41 = tpu.matmul %38, %40, %cst_44 {dimension_numbers = #tpu.dot_dimension_numbers<[1], [0], [0], [1], [0, 0, 1, 1], [], []>} : vector<8x4xbf16>, vector<4x288xbf16>, vector<8x288xf32> -> vector<8x288xf32>
    %42 = arith.addf %36, %41 : vector<8x288xf32>
    %c7 = arith.constant 7 : index
    %c0_45 = arith.constant 0 : index
    %c0_46 = arith.constant 0 : index
    %43 = vector.load %arg3[%c7, %c0_45, %c0_46] : memref<9x8x4xbf16, #tpu.memory_space<vmem>>, vector<1x8x4xbf16>
    %44 = vector.shape_cast %43 : vector<1x8x4xbf16> to vector<8x4xbf16>
    %c0_47 = arith.constant 0 : index
    %c0_48 = arith.constant 0 : index
    %c0_49 = arith.constant 0 : index
    %c37 = arith.constant 37 : index
    %45 = vector.load %arg2[%c0_47, %c0_48, %c0_49, %c37] : memref<1x1x4x342xbf16, #tpu.memory_space<vmem>>, vector<1x1x4x288xbf16>
    %46 = vector.shape_cast %45 : vector<1x1x4x288xbf16> to vector<4x288xbf16>
    %cst_50 = arith.constant dense<0.000000e+00> : vector<8x288xf32>
    %47 = tpu.matmul %44, %46, %cst_50 {dimension_numbers = #tpu.dot_dimension_numbers<[1], [0], [0], [1], [0, 0, 1, 1], [], []>} : vector<8x4xbf16>, vector<4x288xbf16>, vector<8x288xf32> -> vector<8x288xf32>
    %48 = arith.addf %42, %47 : vector<8x288xf32>
    %c8 = arith.constant 8 : index
    %c0_51 = arith.constant 0 : index
    %c0_52 = arith.constant 0 : index
    %49 = vector.load %arg3[%c8, %c0_51, %c0_52] : memref<9x8x4xbf16, #tpu.memory_space<vmem>>, vector<1x8x4xbf16>
    %50 = vector.shape_cast %49 : vector<1x8x4xbf16> to vector<8x4xbf16>
    %c0_53 = arith.constant 0 : index
    %c0_54 = arith.constant 0 : index
    %c0_55 = arith.constant 0 : index
    %c38 = arith.constant 38 : index
    %51 = vector.load %arg2[%c0_53, %c0_54, %c0_55, %c38] : memref<1x1x4x342xbf16, #tpu.memory_space<vmem>>, vector<1x1x4x288xbf16>
    %52 = vector.shape_cast %51 : vector<1x1x4x288xbf16> to vector<4x288xbf16>
    %cst_56 = arith.constant dense<0.000000e+00> : vector<8x288xf32>
    %53 = tpu.matmul %50, %52, %cst_56 {dimension_numbers = #tpu.dot_dimension_numbers<[1], [0], [0], [1], [0, 0, 1, 1], [], []>} : vector<8x4xbf16>, vector<4x288xbf16>, vector<8x288xf32> -> vector<8x288xf32>
    %54 = arith.addf %48, %53 : vector<8x288xf32>
    %c0_57 = arith.constant 0 : index
    %c0_58 = arith.constant 0 : index
    %55 = vector.load %arg4[%c0_57, %c0_58] : memref<8x1xf32, #tpu.memory_space<vmem>>, vector<8x1xf32>
    %56 = vector.broadcast %55 : vector<8x1xf32> to vector<8x288xf32>
    %57 = arith.addf %54, %56 : vector<8x288xf32>
    %cst_59 = arith.constant 0.000000e+00 : f32
    %58 = vector.broadcast %cst_59 : f32 to vector<8x288xf32>
    %59 = arith.maximumf %57, %58 : vector<8x288xf32>
    %60 = arith.truncf %59 : vector<8x288xf32> to vector<8x288xbf16>
    %c0_60 = arith.constant 0 : index
    %c0_61 = arith.constant 0 : index
    %c0_62 = arith.constant 0 : index
    %c0_63 = arith.constant 0 : index
    %61 = vector.load %arg5[%c0_60, %c0_61, %c0_62, %c0_63] : memref<1x1x16x288xbf16, #tpu.memory_space<vmem>>, vector<1x1x8x288xbf16>
    %62 = vector.shape_cast %61 : vector<1x1x8x288xbf16> to vector<8x288xbf16>
    %63 = vector.shape_cast %60 : vector<8x288xbf16> to vector<1x1x8x288xbf16>
    tpu.vector_store %arg5[%c0_60, %c0_61, %c0_62, %c0_63], %63 {strides = array<i32>} : memref<1x1x16x288xbf16, #tpu.memory_space<vmem>>, vector<1x1x8x288xbf16>,
    %64 = arith.subf %59, %57 : vector<8x288xf32>
    %65 = arith.truncf %64 : vector<8x288xf32> to vector<8x288xbf16>
    %c0_64 = arith.constant 0 : index
    %c0_65 = arith.constant 0 : index
    %c8_66 = arith.constant 8 : index
    %c0_67 = arith.constant 0 : index
    %66 = vector.load %arg5[%c0_64, %c0_65, %c8_66, %c0_67] : memref<1x1x16x288xbf16, #tpu.memory_space<vmem>>, vector<1x1x8x288xbf16>
    %67 = vector.shape_cast %66 : vector<1x1x8x288xbf16> to vector<8x288xbf16>
    %68 = vector.shape_cast %65 : vector<8x288xbf16> to vector<1x1x8x288xbf16>
    tpu.vector_store %arg5[%c0_64, %c0_65, %c8_66, %c0_67], %68 {strides = array<i32>} : memref<1x1x16x288xbf16, #tpu.memory_space<vmem>>, vector<1x1x8x288xbf16>,
    return
  }
  func.func @transform_0(%arg0: i32, %arg1: i32) -> (i32, i32, i32, i32) {
    %c0_i32 = arith.constant 0 : i32
    %c0_i32_0 = arith.constant 0 : i32
    %c0_i32_1 = arith.constant 0 : i32
    return %arg0, %arg1, %c0_i32, %c0_i32_0 : i32, i32, i32, i32
  }
  func.func @transform_1(%arg0: i32, %arg1: i32) -> (i32, i32, i32) {
    %c0_i32 = arith.constant 0 : i32
    %c0_i32_0 = arith.constant 0 : i32
    %c0_i32_1 = arith.constant 0 : i32
    %c0_i32_2 = arith.constant 0 : i32
    return %c0_i32, %c0_i32_0, %c0_i32_1 : i32, i32, i32
  }
  func.func @transform_2(%arg0: i32, %arg1: i32) -> (i32, i32) {
    %c0_i32 = arith.constant 0 : i32
    %c0_i32_0 = arith.constant 0 : i32
    %c0_i32_1 = arith.constant 0 : i32
    return %c0_i32, %c0_i32_0 : i32, i32
  }
  func.func @transform_3(%arg0: i32, %arg1: i32) -> (i32, i32, i32, i32) {
    %c0_i32 = arith.constant 0 : i32
    %c0_i32_0 = arith.constant 0 : i32
    %c0_i32_1 = arith.constant 0 : i32
    return %arg0, %arg1, %c0_i32, %c0_i32_0 : i32, i32, i32, i32
  }
}

</mosaic_0001>

<llo_original>
// kernel: tpu_custom_call.1
$region0: #{tpu_custom_call.1}
  #allocation0 [shape = 'u32[]', space=smem, size = 0x4, offset = 0x4, fixed_abs, tag = 'smem constant byte address 0x4 - core index']
  #allocation1 [shape = 'u32[144,128]{1,0:T(1,128)}', space=vmem, size = 0x12000, scoped, tag = 'internal scratch']
  %s0 = inlined_call_operand.vmem [shape: bf16[2,1,4,342], index: 0, kind: input, shape index: {}]
  %s1 = inlined_call_operand.vmem [shape: bf16[9,8,4], index: 1, kind: input, shape index: {}]
  %s2 = inlined_call_operand.vmem [shape: f32[8,1], index: 2, kind: input, shape index: {}]
  %s3 = inlined_call_operand.hbm [shape: bf16[2,1,16,288], index: 3, kind: output, shape index: {}]
  %s4 = sld [smem:[#allocation0]]
  $region45: #{tpu_custom_call.1} parent=0
    _
  %s6 = ssub.s32 1, %s4
  %s7 = scalar_select 0, %s6, %s4
  $region1: #{tpu_custom_call.1} parent=0
    #allocation2 [shape = 'u8[24576]{0}', space=vmem, size = 0x6000, scoped, tag = 'output window, operand 0']
    #allocation3 [shape = 's32[2]{0}', space=sflag, size = 0x8, scoped, tag = 'scoped memory for tpu_custom_call.1']
    %8 = vsyncpa [#allocation3], 0
    %s9 = scalar_lea.sflag [#allocation3], 1
    %10 = vsyncpa %s9, 0
    loop: start=0, step=1, limit=4
    $region2: #{tpu_custom_call.1} parent=1 // loop_pre_header
      _
    $region3: #{tpu_custom_call.1} parent=1 // loop_header
      %s12 = sphi 0, %s16
      %p13 = scmp.ge.s32.totalorder %s12, 4
      %s19 = sphi 0, %s31
      %s20 = sphi 0, %s27
      %s21 = sphi 0, %s19
      %s22 = sphi 0, %s20
      %s23 = sphi 0, %s21
      %s24 = sphi 0, %s22
      %s36 = sphi 0, %s38
      %s39 = sphi 0, %s36
      %s40 = sphi 0, %s39
      %s56 = sphi 0, %s40
      %s60 = sphi 0, %s60
      %s62 = sphi 0, %s60
      %s63 = sphi 0, %s62
      %s77 = sphi 0, %s63
      %s81 = sphi 0, %s81
      %s83 = sphi 0, %s81
      %s84 = sphi 0, %s83
      %s98 = sphi 0, %s84
      %s106 = sphi 0, %s108
      %s109 = sphi 0, %s106
      %s110 = sphi 0, %s109
      %s126 = sphi 0, %s110
    $region4: #{tpu_custom_call.1} parent=1 // loop_header_branch
      %15 = sbr.rel (%p13) target = $region8
    $region5: #{tpu_custom_call.1} parent=1 // loop_body
      %s17 = ssub.s32 %s12, 1
      %s18 = ssub.s32 %s12, 2
      %s25 = sadd.s32 1, %s20
      %p26 = scmp.ge.s32.totalorder %s25, 1
      %s27 = scalar_select %p26, 0, %s25
      %s28 = sadd.s32 1, %s19
      %s29 = scalar_select %p26, %s28, %s19
      %p30 = scmp.ge.s32.totalorder %s29, 2
      %s31 = scalar_select %p30, 0, %s29
      %s32 = ssub.s32 %s19, %s31
      %s33 = ssub.s32 %s20, %s27
      %s34 = sor.u32 %s32, %s33
      %p35 = scmp.eq.s32.totalorder %s34, 0
      %s37 = sadd.s32 %s36, 1
      %s38 = scalar_select %p35, %s36, %s37
      %p41 = pneg %p35
      %p42 = scmp.eq.s32.totalorder %s12, 1
      %p43 = por %p41, %p42
      %p44 = scmp.ne.s32.totalorder %s36, %s39
      %p45 = scmp.eq.s32.totalorder %s12, 0
      %p46 = por %p44, %p45
      %p47 = scmp.ne.s32.totalorder %s36, %s39
      %p48 = scmp.eq.s32.totalorder %s17, 1
      %p49 = por %p47, %p48
      %p50 = scmp.ne.s32.totalorder %s39, %s40
      %p51 = scmp.eq.s32.totalorder %s17, 0
      %p52 = por %p50, %p51
      %p53 = scmp.ne.s32.totalorder %s39, %s40
      %p54 = scmp.eq.s32.totalorder %s18, 1
      %p55 = por %p53, %p54
      %p57 = scmp.ne.s32.totalorder %s40, %s56
      %p58 = scmp.eq.s32.totalorder %s18, 0
      %p59 = por %p57, %p58
      %s61 = sadd.s32 %s60, 1
      %p64 = scmp.eq.s32.totalorder %s12, 1
      %p65 = scmp.ne.s32.totalorder %s60, %s62
      %p66 = scmp.eq.s32.totalorder %s12, 0
      %p67 = por %p65, %p66
      %p68 = scmp.ne.s32.totalorder %s60, %s62
      %p69 = scmp.eq.s32.totalorder %s17, 1
      %p70 = por %p68, %p69
      %p71 = scmp.ne.s32.totalorder %s62, %s63
      %p72 = scmp.eq.s32.totalorder %s17, 0
      %p73 = por %p71, %p72
      %p74 = scmp.ne.s32.totalorder %s62, %s63
      %p75 = scmp.eq.s32.totalorder %s18, 1
      %p76 = por %p74, %p75
      %p78 = scmp.ne.s32.totalorder %s63, %s77
      %p79 = scmp.eq.s32.totalorder %s18, 0
      %p80 = por %p78, %p79
      %s82 = sadd.s32 %s81, 1
      %p85 = scmp.eq.s32.totalorder %s12, 1
      %p86 = scmp.ne.s32.totalorder %s81, %s83
      %p87 = scmp.eq.s32.totalorder %s12, 0
      %p88 = por %p86, %p87
      %p89 = scmp.ne.s32.totalorder %s81, %s83
      %p90 = scmp.eq.s32.totalorder %s17, 1
      %p91 = por %p89, %p90
      %p92 = scmp.ne.s32.totalorder %s83, %s84
      %p93 = scmp.eq.s32.totalorder %s17, 0
      %p94 = por %p92, %p93
      %p95 = scmp.ne.s32.totalorder %s83, %s84
      %p96 = scmp.eq.s32.totalorder %s18, 1
      %p97 = por %p95, %p96
      %p99 = scmp.ne.s32.totalorder %s84, %s98
      %p100 = scmp.eq.s32.totalorder %s18, 0
      %p101 = por %p99, %p100
      %s102 = ssub.s32 %s19, %s31
      %s103 = ssub.s32 %s20, %s27
      %s104 = sor.u32 %s102, %s103
      %p105 = scmp.eq.s32.totalorder %s104, 0
      %s107 = sadd.s32 %s106, 1
      %s108 = scalar_select %p105, %s106, %s107
      %p111 = pneg %p105
      %p112 = scmp.eq.s32.totalorder %s12, 1
      %p113 = por %p111, %p112
      %p114 = scmp.ne.s32.totalorder %s106, %s109
      %p115 = scmp.eq.s32.totalorder %s12, 0
      %p116 = por %p114, %p115
      %p117 = scmp.ne.s32.totalorder %s106, %s109
      %p118 = scmp.eq.s32.totalorder %s17, 1
      %p119 = por %p117, %p118
      %p120 = scmp.ne.s32.totalorder %s109, %s110
      %p121 = scmp.eq.s32.totalorder %s17, 0
      %p122 = por %p120, %p121
      %p123 = scmp.ne.s32.totalorder %s109, %s110
      %p124 = scmp.eq.s32.totalorder %s18, 1
      %p125 = por %p123, %p124
      %p127 = scmp.ne.s32.totalorder %s110, %s126
      %p128 = scmp.eq.s32.totalorder %s18, 0
      %p129 = por %p127, %p128
      %p130 = scmp.le.s32.totalorder 1, %s12
      %p131 = scmp.lt.s32.totalorder %s12, 3
      %p132 = pnand %p130, %p131
      %p133 = pneg %p132
      // Predicated region
      $region9: #{tpu_custom_call.1} parent=5 // pred_check
        _
      $region10: #{tpu_custom_call.1} parent=5 // pred_check_branch
        %135 = sbr.rel (%p132) target = $region12
      $region11: #{tpu_custom_call.1} parent=5 // pred_region
        %s136 = ssub.s32 %s12, 1
        // Predicated region
        $region13: #{tpu_custom_call.1} parent=11 // pred_check
          %p137 = pneg %p73
        $region14: #{tpu_custom_call.1} parent=11 // pred_check_branch
          %139 = sbr.rel (%p137) target = $region16
        $region15: #{tpu_custom_call.1} parent=11 // pred_region
          _
        $region16: #{tpu_custom_call.1} parent=11 // pred_fallthru
          _
        // Predicated region
        $region17: #{tpu_custom_call.1} parent=11 // pred_check
          %p140 = pneg %p94
        $region18: #{tpu_custom_call.1} parent=11 // pred_check_branch
          %142 = sbr.rel (%p140) target = $region20
        $region19: #{tpu_custom_call.1} parent=11 // pred_region
          _
        $region20: #{tpu_custom_call.1} parent=11 // pred_fallthru
          _
      $region12: #{tpu_custom_call.1} parent=5 // pred_fallthru
        _
      %p143 = scmp.lt.s32.totalorder %s12, 2
      // Predicated region
      $region21: #{tpu_custom_call.1} parent=5 // pred_check
        %p144 = pneg %p143
      $region22: #{tpu_custom_call.1} parent=5 // pred_check_branch
        %146 = sbr.rel (%p144) target = $region24
      $region23: #{tpu_custom_call.1} parent=5 // pred_region
        // Predicated region
        $region25: #{tpu_custom_call.1} parent=23 // pred_check
          %p147 = pneg %p46
        $region26: #{tpu_custom_call.1} parent=23 // pred_check_branch
          %149 = sbr.rel (%p147) target = $region28
        $region27: #{tpu_custom_call.1} parent=23 // pred_region
          %p150 = scmp.lt.s32.totalorder %s19, 1
          %s151 = scalar_select %p150, %s19, 1
          %p152 = scmp.lt.s32.totalorder %s20, 0
          %s153 = scalar_select %p152, %s20, 0
          %s154 = smul.addr %s153, 3
          %s155 = smul.addr %s151, 3
          %s156 = sadd.s32 %s154, %s155
          %s157 = smul.addr %s156, 2
          %s158 = scalar_lea.vmem %s0, %s157
        $region28: #{tpu_custom_call.1} parent=23 // pred_fallthru
          _
      $region24: #{tpu_custom_call.1} parent=5 // pred_fallthru
        _
      %p159 = scmp.le.s32.totalorder 1, %s12
      %p160 = scmp.lt.s32.totalorder %s12, 3
      %p161 = pnand %p159, %p160
      %p162 = pneg %p161
      // Predicated region
      $region29: #{tpu_custom_call.1} parent=5 // pred_check
        _
      $region30: #{tpu_custom_call.1} parent=5 // pred_check_branch
        %164 = sbr.rel (%p161) target = $region32
      $region31: #{tpu_custom_call.1} parent=5 // pred_region
        %s165 = ssub.s32 %s12, 1
        %p166 = scmp.lt.s32.totalorder %s21, 1
        %s167 = scalar_select %p166, %s21, 1
        %p168 = scmp.lt.s32.totalorder %s22, 0
        %s169 = scalar_select %p168, %s22, 0
        %s170 = smul.addr %s169, 3
        %s171 = smul.addr %s167, 3
        %s172 = sadd.s32 %s170, %s171
        %s173 = smul.addr %s172, 2
        %s174 = scalar_lea.vmem %s0, %s173
        %p175 = pneg %p52
        %p176 = pneg %p49
        %p177 = pneg %p73
        %p178 = pneg %p70
        %p179 = pneg %p94
        %p180 = pneg %p91
        %p181 = pneg %p122
        %p182 = pneg %p119
        %s183 = sand.u32 %s109, 1
        %s184 = scalar_lea.sflag [#allocation3], %s183
        %s185 = sand.u32 %s109, 1
        %s186 = smul.addr %s185, 24
        %s187 = scalar_lea.vmem [#allocation2], %s186
        %p188 = scmp.lt.s32.totalorder %s21, 1
        %s189 = scalar_select %p188, %s21, 1
        %p190 = scmp.lt.s32.totalorder %s22, 0
        %s191 = scalar_select %p190, %s22, 0
        %s192 = smul.addr %s191, 3
        %s193 = smul.addr %s189, 3
        %s194 = sadd.s32 %s192, %s193
        %s195 = smul.addr %s194, 2
        %s196 = scalar_lea.vmem %s0, %s195
        %v198 = vld [vmem:[%s1] sm:$0xf]
        %v199 = vld [vmem:[%s196] sm:$0x3f]
        %s200 = scalar_lea.vmem %s1, 4
        %v201 = vld [vmem:[%s200] sm:$0xf]
        %v203 = vcombine.high %v199, %v199
        %v205 = vunpack.c.l.s4 1983009808
        %v206 = vunpack.c.0.s8 %v205
        %v207 = vlaneseq
        %v208 = vshrl.u32 %v207, 7
        %v209 = vsub.s32 %v206, %v208
        %v210 = vrot.slane %v199, %v209
        %v212 = vunpack.c.l.s4 1983009808
        %v213 = vunpack.c.0.s8 %v212
        %v214 = vlaneseq
        %v215 = vshrl.u32 %v214, 7
        %v216 = vsub.s32 %v213, %v215
        %v217 = vrot.slane %v203, %v216
        %v218 = vcombine.high %v210, %v210
        %219 = vrot.lane.b32.xlu0 %v210, 127
        %v220 = vpop.permute.xlu0 %219
        %221 = vrot.lane.b32.xlu0 %v218, 127
        %v222 = vpop.permute.xlu0 %221
        %223 = vrot.lane.b32.xlu0 %v217, 127
        %v224 = vpop.permute.xlu0 %223
        %vm225 = vcmask 1039360
        %v226 = vsel %vm225, %v220, %v222
        %v227 = vsel %vm225, %v222, %v224
        %vm228 = vcmask 31744
        %v230 = vsel %vm228, %v201, 0
        %vm232 = vcmask 1041408
        %v234 = vsel %vm232, %v226, 0
        %v237 = vsel %vm232, %v227, 0
        %v240 = vsel %vm232, %v224, 0
        %242 = vmatprep.subr.bf16.mxu0 0
        %243 = vmatpush1.bf16.msra.mxu0 0
        %244 = vmatprep.subr.bf16.mxu0 0
        %245 = vmatpush1.bf16.msra.mxu0 0
        %246 = vmatprep.subr.bf16.mxu0 0
        %247 = vmatpush1.bf16.msra.mxu0 0
        %248 = vmatprep.subr.bf16.mxu0 0
        %249 = vmatpush1.bf16.msra.mxu0 0
        %250 = vmatprep.subr.bf16.mxu0 0
        %251 = vmatpush1.bf16.msra.mxu0 0
        %252 = vmatprep.subr.bf16.mxu0 0
        %253 = vmatpush1.bf16.msra.mxu0 0
        %254 = vmatprep.subr.bf16.mxu0 0
        %255 = vmatpush1.bf16.msra.mxu0 0
        %256 = vmatprep.subr.bf16.mxu0 %v237
        %257 = vmatpush1.bf16.msra.mxu0 %v234
        %258 = vmatprep.subr.bf16.mxu0 0
        %259 = vmatpush2.bf16.msra.mxu0 0
        %260 = vmatprep.subr.bf16.mxu0 0
        %261 = vmatpush2.bf16.msra.mxu0 0
        %262 = vmatprep.subr.bf16.mxu0 0
        %263 = vmatpush2.bf16.msra.mxu0 0
        %264 = vmatprep.subr.bf16.mxu0 0
        %265 = vmatpush2.bf16.msra.mxu0 0
        %266 = vmatprep.subr.bf16.mxu0 0
        %267 = vmatpush2.bf16.msra.mxu0 0
        %268 = vmatprep.subr.bf16.mxu0 0
        %269 = vmatpush2.bf16.msra.mxu0 0
        %270 = vmatprep.subr.bf16.mxu0 0
        %271 = vmatpush2.bf16.msra.mxu0 0
        %272 = vmatprep.subr.bf16.mxu0 0
        %273 = vmatpush2.bf16.msra.mxu0 0
        %274 = vmatprep.mubr.bf16.mxu0 0
        %275 = vmatmul.mubr.bf16.gmra.mxu0 %v230
        %v276 = vpop.f32.mrf.mxu0
        %v277 = vadd.f32 0.0, %v276
        %v278 = vpop.f32.mrf.mxu0
        %v279 = vadd.f32 0.0, %v278
        %v280 = vpop.f32.mrf.mxu0
        %v281 = vpop.f32.mrf.mxu0
        %282 = vdwg.mxu0
        %283 = vmatprep.subr.bf16.mxu0 0
        %284 = vmatpush1.bf16.msra.mxu0 0
        %285 = vmatprep.subr.bf16.mxu0 0
        %286 = vmatpush1.bf16.msra.mxu0 0
        %287 = vmatprep.subr.bf16.mxu0 0
        %288 = vmatpush1.bf16.msra.mxu0 0
        %289 = vmatprep.subr.bf16.mxu0 0
        %290 = vmatpush1.bf16.msra.mxu0 0
        %291 = vmatprep.subr.bf16.mxu0 0
        %292 = vmatpush1.bf16.msra.mxu0 0
        %293 = vmatprep.subr.bf16.mxu0 0
        %294 = vmatpush1.bf16.msra.mxu0 0
        %295 = vmatprep.subr.bf16.mxu0 0
        %296 = vmatpush1.bf16.msra.mxu0 0
        %297 = vmatprep.subr.bf16.mxu0 0
        %298 = vmatpush1.bf16.msra.mxu0 %v240
        %299 = vmatprep.subr.bf16.mxu0 0
        %300 = vmatpush2.bf16.msra.mxu0 0
        %301 = vmatprep.subr.bf16.mxu0 0
        %302 = vmatpush2.bf16.msra.mxu0 0
        %303 = vmatprep.subr.bf16.mxu0 0
        %304 = vmatpush2.bf16.msra.mxu0 0
        %305 = vmatprep.subr.bf16.mxu0 0
        %306 = vmatpush2.bf16.msra.mxu0 0
        %307 = vmatprep.subr.bf16.mxu0 0
        %308 = vmatpush2.bf16.msra.mxu0 0
        %309 = vmatprep.subr.bf16.mxu0 0
        %310 = vmatpush2.bf16.msra.mxu0 0
        %311 = vmatprep.subr.bf16.mxu0 0
        %312 = vmatpush2.bf16.msra.mxu0 0
        %313 = vmatprep.subr.bf16.mxu0 0
        %314 = vmatpush2.bf16.msra.mxu0 0
        %315 = vmatprep.mubr.bf16.mxu0 0
        %316 = vmatmul.mubr.bf16.gmra.mxu0 %v230
        %v317 = vpop.f32.mrf.mxu0
        %v318 = vadd.f32 0.0, %v317
        %v319 = vpop.f32.mrf.mxu0
        %v320 = vpop.f32.mrf.mxu0
        %v321 = vpop.f32.mrf.mxu0
        %322 = vdwg.mxu0
        %v324 = vsel %vm228, %v198, 0
        %v327 = vsel %vm232, %v210, 0
        %v330 = vsel %vm232, %v218, 0
        %v333 = vsel %vm232, %v217, 0
        %335 = vmatprep.subr.bf16.mxu0 0
        %336 = vmatpush1.bf16.msra.mxu0 0
        %337 = vmatprep.subr.bf16.mxu0 0
        %338 = vmatpush1.bf16.msra.mxu0 0
        %339 = vmatprep.subr.bf16.mxu0 0
        %340 = vmatpush1.bf16.msra.mxu0 0
        %341 = vmatprep.subr.bf16.mxu0 0
        %342 = vmatpush1.bf16.msra.mxu0 0
        %343 = vmatprep.subr.bf16.mxu0 0
        %344 = vmatpush1.bf16.msra.mxu0 0
        %345 = vmatprep.subr.bf16.mxu0 0
        %346 = vmatpush1.bf16.msra.mxu0 0
        %347 = vmatprep.subr.bf16.mxu0 0
        %348 = vmatpush1.bf16.msra.mxu0 0
        %349 = vmatprep.subr.bf16.mxu0 %v330
        %350 = vmatpush1.bf16.msra.mxu0 %v327
        %351 = vmatprep.subr.bf16.mxu0 0
        %352 = vmatpush2.bf16.msra.mxu0 0
        %353 = vmatprep.subr.bf16.mxu0 0
        %354 = vmatpush2.bf16.msra.mxu0 0
        %355 = vmatprep.subr.bf16.mxu0 0
        %356 = vmatpush2.bf16.msra.mxu0 0
        %357 = vmatprep.subr.bf16.mxu0 0
        %358 = vmatpush2.bf16.msra.mxu0 0
        %359 = vmatprep.subr.bf16.mxu0 0
        %360 = vmatpush2.bf16.msra.mxu0 0
        %361 = vmatprep.subr.bf16.mxu0 0
        %362 = vmatpush2.bf16.msra.mxu0 0
        %363 = vmatprep.subr.bf16.mxu0 0
        %364 = vmatpush2.bf16.msra.mxu0 0
        %365 = vmatprep.subr.bf16.mxu0 0
        %366 = vmatpush2.bf16.msra.mxu0 0
        %367 = vmatprep.mubr.bf16.mxu0 0
        %368 = vmatmul.mubr.bf16.gmra.mxu0 %v324
        %v369 = vpop.f32.mrf.mxu0
        %v370 = vadd.f32 %v277, %v369
        %v371 = vpop.f32.mrf.mxu0
        %v372 = vadd.f32 %v279, %v371
        %v373 = vpop.f32.mrf.mxu0
        %v374 = vpop.f32.mrf.mxu0
        %375 = vdwg.mxu0
        %376 = vmatprep.subr.bf16.mxu0 0
        %377 = vmatpush1.bf16.msra.mxu0 0
        %378 = vmatprep.subr.bf16.mxu0 0
        %379 = vmatpush1.bf16.msra.mxu0 0
        %380 = vmatprep.subr.bf16.mxu0 0
        %381 = vmatpush1.bf16.msra.mxu0 0
        %382 = vmatprep.subr.bf16.mxu0 0
        %383 = vmatpush1.bf16.msra.mxu0 0
        %384 = vmatprep.subr.bf16.mxu0 0
        %385 = vmatpush1.bf16.msra.mxu0 0
        %386 = vmatprep.subr.bf16.mxu0 0
        %387 = vmatpush1.bf16.msra.mxu0 0
        %388 = vmatprep.subr.bf16.mxu0 0
        %389 = vmatpush1.bf16.msra.mxu0 0
        %390 = vmatprep.subr.bf16.mxu0 0
        %391 = vmatpush1.bf16.msra.mxu0 %v333
        %392 = vmatprep.subr.bf16.mxu0 0
        %393 = vmatpush2.bf16.msra.mxu0 0
        %394 = vmatprep.subr.bf16.mxu0 0
        %395 = vmatpush2.bf16.msra.mxu0 0
        %396 = vmatprep.subr.bf16.mxu0 0
        %397 = vmatpush2.bf16.msra.mxu0 0
        %398 = vmatprep.subr.bf16.mxu0 0
        %399 = vmatpush2.bf16.msra.mxu0 0
        %400 = vmatprep.subr.bf16.mxu0 0
        %401 = vmatpush2.bf16.msra.mxu0 0
        %402 = vmatprep.subr.bf16.mxu0 0
        %403 = vmatpush2.bf16.msra.mxu0 0
        %404 = vmatprep.subr.bf16.mxu0 0
        %405 = vmatpush2.bf16.msra.mxu0 0
        %406 = vmatprep.subr.bf16.mxu0 0
        %407 = vmatpush2.bf16.msra.mxu0 0
        %408 = vmatprep.mubr.bf16.mxu0 0
        %409 = vmatmul.mubr.bf16.gmra.mxu0 %v324
        %v410 = vpop.f32.mrf.mxu0
        %v411 = vadd.f32 %v318, %v410
        %v412 = vpop.f32.mrf.mxu0
        %v413 = vpop.f32.mrf.mxu0
        %v414 = vpop.f32.mrf.mxu0
        %415 = vdwg.mxu0
        %s416 = scalar_lea.vmem %s1, 8
        %v417 = vld [vmem:[%s416] sm:$0xf]
        %v418 = vld [vmem:[%s196] sm:$0x3f]
        %v420 = vcombine.high %v418, %v418
        %v422 = vunpack.c.l.s4 1983009808
        %v423 = vunpack.c.0.s8 %v422
        %v424 = vlaneseq
        %v425 = vshrl.u32 %v424, 7
        %v426 = vsub.s32 %v423, %v425
        %v427 = vrot.slane %v418, %v426
        %v429 = vunpack.c.l.s4 1983009808
        %v430 = vunpack.c.0.s8 %v429
        %v431 = vlaneseq
        %v432 = vshrl.u32 %v431, 7
        %v433 = vsub.s32 %v430, %v432
        %v434 = vrot.slane %v420, %v433
        %v435 = vcombine.high %v427, %v427
        %436 = vrot.lane.b32.xlu0 %v427, 126
        %v437 = vpop.permute.xlu0 %436
        %438 = vrot.lane.b32.xlu0 %v435, 126
        %v439 = vpop.permute.xlu0 %438
        %440 = vrot.lane.b32.xlu0 %v434, 126
        %v441 = vpop.permute.xlu0 %440
        %vm442 = vcmask 1031168
        %v443 = vsel %vm442, %v437, %v439
        %v444 = vsel %vm442, %v439, %v441
        %v446 = vsel %vm228, %v417, 0
        %v449 = vsel %vm232, %v443, 0
        %v452 = vsel %vm232, %v444, 0
        %v455 = vsel %vm232, %v441, 0
        %457 = vmatprep.subr.bf16.mxu0 0
        %458 = vmatpush1.bf16.msra.mxu0 0
        %459 = vmatprep.subr.bf16.mxu0 0
        %460 = vmatpush1.bf16.msra.mxu0 0
        %461 = vmatprep.subr.bf16.mxu0 0
        %462 = vmatpush1.bf16.msra.mxu0 0
        %463 = vmatprep.subr.bf16.mxu0 0
        %464 = vmatpush1.bf16.msra.mxu0 0
        %465 = vmatprep.subr.bf16.mxu0 0
        %466 = vmatpush1.bf16.msra.mxu0 0
        %467 = vmatprep.subr.bf16.mxu0 0
        %468 = vmatpush1.bf16.msra.mxu0 0
        %469 = vmatprep.subr.bf16.mxu0 0
        %470 = vmatpush1.bf16.msra.mxu0 0
        %471 = vmatprep.subr.bf16.mxu0 %v452
        %472 = vmatpush1.bf16.msra.mxu0 %v449
        %473 = vmatprep.subr.bf16.mxu0 0
        %474 = vmatpush2.bf16.msra.mxu0 0
        %475 = vmatprep.subr.bf16.mxu0 0
        %476 = vmatpush2.bf16.msra.mxu0 0
        %477 = vmatprep.subr.bf16.mxu0 0
        %478 = vmatpush2.bf16.msra.mxu0 0
        %479 = vmatprep.subr.bf16.mxu0 0
        %480 = vmatpush2.bf16.msra.mxu0 0
        %481 = vmatprep.subr.bf16.mxu0 0
        %482 = vmatpush2.bf16.msra.mxu0 0
        %483 = vmatprep.subr.bf16.mxu0 0
        %484 = vmatpush2.bf16.msra.mxu0 0
        %485 = vmatprep.subr.bf16.mxu0 0
        %486 = vmatpush2.bf16.msra.mxu0 0
        %487 = vmatprep.subr.bf16.mxu0 0
        %488 = vmatpush2.bf16.msra.mxu0 0
        %489 = vmatprep.mubr.bf16.mxu0 0
        %490 = vmatmul.mubr.bf16.gmra.mxu0 %v446
        %v491 = vpop.f32.mrf.mxu0
        %v492 = vadd.f32 0.0, %v491
        %v493 = vpop.f32.mrf.mxu0
        %v494 = vadd.f32 0.0, %v493
        %v495 = vpop.f32.mrf.mxu0
        %v496 = vpop.f32.mrf.mxu0
        %497 = vdwg.mxu0
        %498 = vmatprep.subr.bf16.mxu0 0
        %499 = vmatpush1.bf16.msra.mxu0 0
        %500 = vmatprep.subr.bf16.mxu0 0
        %501 = vmatpush1.bf16.msra.mxu0 0
        %502 = vmatprep.subr.bf16.mxu0 0
        %503 = vmatpush1.bf16.msra.mxu0 0
        %504 = vmatprep.subr.bf16.mxu0 0
        %505 = vmatpush1.bf16.msra.mxu0 0
        %506 = vmatprep.subr.bf16.mxu0 0
        %507 = vmatpush1.bf16.msra.mxu0 0
        %508 = vmatprep.subr.bf16.mxu0 0
        %509 = vmatpush1.bf16.msra.mxu0 0
        %510 = vmatprep.subr.bf16.mxu0 0
        %511 = vmatpush1.bf16.msra.mxu0 0
        %512 = vmatprep.subr.bf16.mxu0 0
        %513 = vmatpush1.bf16.msra.mxu0 %v455
        %514 = vmatprep.subr.bf16.mxu0 0
        %515 = vmatpush2.bf16.msra.mxu0 0
        %516 = vmatprep.subr.bf16.mxu0 0
        %517 = vmatpush2.bf16.msra.mxu0 0
        %518 = vmatprep.subr.bf16.mxu0 0
        %519 = vmatpush2.bf16.msra.mxu0 0
        %520 = vmatprep.subr.bf16.mxu0 0
        %521 = vmatpush2.bf16.msra.mxu0 0
        %522 = vmatprep.subr.bf16.mxu0 0
        %523 = vmatpush2.bf16.msra.mxu0 0
        %524 = vmatprep.subr.bf16.mxu0 0
        %525 = vmatpush2.bf16.msra.mxu0 0
        %526 = vmatprep.subr.bf16.mxu0 0
        %527 = vmatpush2.bf16.msra.mxu0 0
        %528 = vmatprep.subr.bf16.mxu0 0
        %529 = vmatpush2.bf16.msra.mxu0 0
        %530 = vmatprep.mubr.bf16.mxu0 0
        %531 = vmatmul.mubr.bf16.gmra.mxu0 %v446
        %v532 = vpop.f32.mrf.mxu0
        %v533 = vadd.f32 0.0, %v532
        %v534 = vpop.f32.mrf.mxu0
        %v535 = vpop.f32.mrf.mxu0
        %v536 = vpop.f32.mrf.mxu0
        %537 = vdwg.mxu0
        %v538 = vadd.f32 %v370, %v492
        %v539 = vadd.f32 %v372, %v494
        %v540 = vadd.f32 %v411, %v533
        %s541 = scalar_lea.vmem %s1, 12
        %v542 = vld [vmem:[%s541] sm:$0xf]
        %v543 = vld [vmem:[%s196] sm:$0x3f]
        %v545 = vcombine.high %v543, %v543
        %v547 = vunpack.c.l.s4 1983009808
        %v548 = vunpack.c.0.s8 %v547
        %v549 = vlaneseq
        %v550 = vshrl.u32 %v549, 7
        %v551 = vsub.s32 %v548, %v550
        %v552 = vrot.slane %v543, %v551
        %v554 = vunpack.c.l.s4 1983009808
        %v555 = vunpack.c.0.s8 %v554
        %v556 = vlaneseq
        %v557 = vshrl.u32 %v556, 7
        %v558 = vsub.s32 %v555, %v557
        %v559 = vrot.slane %v545, %v558
        %v560 = vcombine.high %v552, %v552
        %561 = vrot.lane.b32.xlu0 %v552, 110
        %v562 = vpop.permute.xlu0 %561
        %563 = vrot.lane.b32.xlu0 %v560, 110
        %v564 = vpop.permute.xlu0 %563
        %565 = vrot.lane.b32.xlu0 %v559, 110
        %v566 = vpop.permute.xlu0 %565
        %vm567 = vcmask 900096
        %v568 = vsel %vm567, %v562, %v564
        %v569 = vsel %vm567, %v564, %v566
        %v571 = vsel %vm228, %v542, 0
        %v574 = vsel %vm232, %v568, 0
        %v577 = vsel %vm232, %v569, 0
        %v580 = vsel %vm232, %v566, 0
        %582 = vmatprep.subr.bf16.mxu0 0
        %583 = vmatpush1.bf16.msra.mxu0 0
        %584 = vmatprep.subr.bf16.mxu0 0
        %585 = vmatpush1.bf16.msra.mxu0 0
        %586 = vmatprep.subr.bf16.mxu0 0
        %587 = vmatpush1.bf16.msra.mxu0 0
        %588 = vmatprep.subr.bf16.mxu0 0
        %589 = vmatpush1.bf16.msra.mxu0 0
        %590 = vmatprep.subr.bf16.mxu0 0
        %591 = vmatpush1.bf16.msra.mxu0 0
        %592 = vmatprep.subr.bf16.mxu0 0
        %593 = vmatpush1.bf16.msra.mxu0 0
        %594 = vmatprep.subr.bf16.mxu0 0
        %595 = vmatpush1.bf16.msra.mxu0 0
        %596 = vmatprep.subr.bf16.mxu0 %v577
        %597 = vmatpush1.bf16.msra.mxu0 %v574
        %598 = vmatprep.subr.bf16.mxu0 0
        %599 = vmatpush2.bf16.msra.mxu0 0
        %600 = vmatprep.subr.bf16.mxu0 0
        %601 = vmatpush2.bf16.msra.mxu0 0
        %602 = vmatprep.subr.bf16.mxu0 0
        %603 = vmatpush2.bf16.msra.mxu0 0
        %604 = vmatprep.subr.bf16.mxu0 0
        %605 = vmatpush2.bf16.msra.mxu0 0
        %606 = vmatprep.subr.bf16.mxu0 0
        %607 = vmatpush2.bf16.msra.mxu0 0
        %608 = vmatprep.subr.bf16.mxu0 0
        %609 = vmatpush2.bf16.msra.mxu0 0
        %610 = vmatprep.subr.bf16.mxu0 0
        %611 = vmatpush2.bf16.msra.mxu0 0
        %612 = vmatprep.subr.bf16.mxu0 0
        %613 = vmatpush2.bf16.msra.mxu0 0
        %614 = vmatprep.mubr.bf16.mxu0 0
        %615 = vmatmul.mubr.bf16.gmra.mxu0 %v571
        %v616 = vpop.f32.mrf.mxu0
        %v617 = vadd.f32 0.0, %v616
        %v618 = vpop.f32.mrf.mxu0
        %v619 = vadd.f32 0.0, %v618
        %v620 = vpop.f32.mrf.mxu0
        %v621 = vpop.f32.mrf.mxu0
        %622 = vdwg.mxu0
        %623 = vmatprep.subr.bf16.mxu0 0
        %624 = vmatpush1.bf16.msra.mxu0 0
        %625 = vmatprep.subr.bf16.mxu0 0
        %626 = vmatpush1.bf16.msra.mxu0 0
        %627 = vmatprep.subr.bf16.mxu0 0
        %628 = vmatpush1.bf16.msra.mxu0 0
        %629 = vmatprep.subr.bf16.mxu0 0
        %630 = vmatpush1.bf16.msra.mxu0 0
        %631 = vmatprep.subr.bf16.mxu0 0
        %632 = vmatpush1.bf16.msra.mxu0 0
        %633 = vmatprep.subr.bf16.mxu0 0
        %634 = vmatpush1.bf16.msra.mxu0 0
        %635 = vmatprep.subr.bf16.mxu0 0
        %636 = vmatpush1.bf16.msra.mxu0 0
        %637 = vmatprep.subr.bf16.mxu0 0
        %638 = vmatpush1.bf16.msra.mxu0 %v580
        %639 = vmatprep.subr.bf16.mxu0 0
        %640 = vmatpush2.bf16.msra.mxu0 0
        %641 = vmatprep.subr.bf16.mxu0 0
        %642 = vmatpush2.bf16.msra.mxu0 0
        %643 = vmatprep.subr.bf16.mxu0 0
        %644 = vmatpush2.bf16.msra.mxu0 0
        %645 = vmatprep.subr.bf16.mxu0 0
        %646 = vmatpush2.bf16.msra.mxu0 0
        %647 = vmatprep.subr.bf16.mxu0 0
        %648 = vmatpush2.bf16.msra.mxu0 0
        %649 = vmatprep.subr.bf16.mxu0 0
        %650 = vmatpush2.bf16.msra.mxu0 0
        %651 = vmatprep.subr.bf16.mxu0 0
        %652 = vmatpush2.bf16.msra.mxu0 0
        %653 = vmatprep.subr.bf16.mxu0 0
        %654 = vmatpush2.bf16.msra.mxu0 0
        %655 = vmatprep.mubr.bf16.mxu0 0
        %656 = vmatmul.mubr.bf16.gmra.mxu0 %v571
        %v657 = vpop.f32.mrf.mxu0
        %v658 = vadd.f32 0.0, %v657
        %v659 = vpop.f32.mrf.mxu0
        %v660 = vpop.f32.mrf.mxu0
        %v661 = vpop.f32.mrf.mxu0
        %662 = vdwg.mxu0
        %v663 = vadd.f32 %v538, %v617
        %v664 = vadd.f32 %v539, %v619
        %v665 = vadd.f32 %v540, %v658
        %s666 = scalar_lea.vmem %s1, 16
        %v667 = vld [vmem:[%s666] sm:$0xf]
        %v668 = vld [vmem:[%s196] sm:$0x3f]
        %v670 = vcombine.high %v668, %v668
        %v672 = vunpack.c.l.s4 1983009808
        %v673 = vunpack.c.0.s8 %v672
        %v674 = vlaneseq
        %v675 = vshrl.u32 %v674, 7
        %v676 = vsub.s32 %v673, %v675
        %v677 = vrot.slane %v668, %v676
        %v679 = vunpack.c.l.s4 1983009808
        %v680 = vunpack.c.0.s8 %v679
        %v681 = vlaneseq
        %v682 = vshrl.u32 %v681, 7
        %v683 = vsub.s32 %v680, %v682
        %v684 = vrot.slane %v670, %v683
        %v685 = vcombine.high %v677, %v677
        %686 = vrot.lane.b32.xlu0 %v677, 109
        %v687 = vpop.permute.xlu0 %686
        %688 = vrot.lane.b32.xlu0 %v685, 109
        %v689 = vpop.permute.xlu0 %688
        %690 = vrot.lane.b32.xlu0 %v684, 109
        %v691 = vpop.permute.xlu0 %690
        %vm692 = vcmask 891904
        %v693 = vsel %vm692, %v687, %v689
        %v694 = vsel %vm692, %v689, %v691
        %v696 = vsel %vm228, %v667, 0
        %v699 = vsel %vm232, %v693, 0
        %v702 = vsel %vm232, %v694, 0
        %v705 = vsel %vm232, %v691, 0
        %707 = vmatprep.subr.bf16.mxu0 0
        %708 = vmatpush1.bf16.msra.mxu0 0
        %709 = vmatprep.subr.bf16.mxu0 0
        %710 = vmatpush1.bf16.msra.mxu0 0
        %711 = vmatprep.subr.bf16.mxu0 0
        %712 = vmatpush1.bf16.msra.mxu0 0
        %713 = vmatprep.subr.bf16.mxu0 0
        %714 = vmatpush1.bf16.msra.mxu0 0
        %715 = vmatprep.subr.bf16.mxu0 0
        %716 = vmatpush1.bf16.msra.mxu0 0
        %717 = vmatprep.subr.bf16.mxu0 0
        %718 = vmatpush1.bf16.msra.mxu0 0
        %719 = vmatprep.subr.bf16.mxu0 0
        %720 = vmatpush1.bf16.msra.mxu0 0
        %721 = vmatprep.subr.bf16.mxu0 %v702
        %722 = vmatpush1.bf16.msra.mxu0 %v699
        %723 = vmatprep.subr.bf16.mxu0 0
        %724 = vmatpush2.bf16.msra.mxu0 0
        %725 = vmatprep.subr.bf16.mxu0 0
        %726 = vmatpush2.bf16.msra.mxu0 0
        %727 = vmatprep.subr.bf16.mxu0 0
        %728 = vmatpush2.bf16.msra.mxu0 0
        %729 = vmatprep.subr.bf16.mxu0 0
        %730 = vmatpush2.bf16.msra.mxu0 0
        %731 = vmatprep.subr.bf16.mxu0 0
        %732 = vmatpush2.bf16.msra.mxu0 0
        %733 = vmatprep.subr.bf16.mxu0 0
        %734 = vmatpush2.bf16.msra.mxu0 0
        %735 = vmatprep.subr.bf16.mxu0 0
        %736 = vmatpush2.bf16.msra.mxu0 0
        %737 = vmatprep.subr.bf16.mxu0 0
        %738 = vmatpush2.bf16.msra.mxu0 0
        %739 = vmatprep.mubr.bf16.mxu0 0
        %740 = vmatmul.mubr.bf16.gmra.mxu0 %v696
        %v741 = vpop.f32.mrf.mxu0
        %v742 = vadd.f32 0.0, %v741
        %v743 = vpop.f32.mrf.mxu0
        %v744 = vadd.f32 0.0, %v743
        %v745 = vpop.f32.mrf.mxu0
        %v746 = vpop.f32.mrf.mxu0
        %747 = vdwg.mxu0
        %748 = vmatprep.subr.bf16.mxu0 0
        %749 = vmatpush1.bf16.msra.mxu0 0
        %750 = vmatprep.subr.bf16.mxu0 0
        %751 = vmatpush1.bf16.msra.mxu0 0
        %752 = vmatprep.subr.bf16.mxu0 0
        %753 = vmatpush1.bf16.msra.mxu0 0
        %754 = vmatprep.subr.bf16.mxu0 0
        %755 = vmatpush1.bf16.msra.mxu0 0
        %756 = vmatprep.subr.bf16.mxu0 0
        %757 = vmatpush1.bf16.msra.mxu0 0
        %758 = vmatprep.subr.bf16.mxu0 0
        %759 = vmatpush1.bf16.msra.mxu0 0
        %760 = vmatprep.subr.bf16.mxu0 0
        %761 = vmatpush1.bf16.msra.mxu0 0
        %762 = vmatprep.subr.bf16.mxu0 0
        %763 = vmatpush1.bf16.msra.mxu0 %v705
        %764 = vmatprep.subr.bf16.mxu0 0
        %765 = vmatpush2.bf16.msra.mxu0 0
        %766 = vmatprep.subr.bf16.mxu0 0
        %767 = vmatpush2.bf16.msra.mxu0 0
        %768 = vmatprep.subr.bf16.mxu0 0
        %769 = vmatpush2.bf16.msra.mxu0 0
        %770 = vmatprep.subr.bf16.mxu0 0
        %771 = vmatpush2.bf16.msra.mxu0 0
        %772 = vmatprep.subr.bf16.mxu0 0
        %773 = vmatpush2.bf16.msra.mxu0 0
        %774 = vmatprep.subr.bf16.mxu0 0
        %775 = vmatpush2.bf16.msra.mxu0 0
        %776 = vmatprep.subr.bf16.mxu0 0
        %777 = vmatpush2.bf16.msra.mxu0 0
        %778 = vmatprep.subr.bf16.mxu0 0
        %779 = vmatpush2.bf16.msra.mxu0 0
        %780 = vmatprep.mubr.bf16.mxu0 0
        %781 = vmatmul.mubr.bf16.gmra.mxu0 %v696
        %v782 = vpop.f32.mrf.mxu0
        %v783 = vadd.f32 0.0, %v782
        %v784 = vpop.f32.mrf.mxu0
        %v785 = vpop.f32.mrf.mxu0
        %v786 = vpop.f32.mrf.mxu0
        %787 = vdwg.mxu0
        %v788 = vadd.f32 %v663, %v742
        %v789 = vadd.f32 %v664, %v744
        %v790 = vadd.f32 %v665, %v783
        %s791 = scalar_lea.vmem %s1, 20
        %v792 = vld [vmem:[%s791] sm:$0xf]
        %v793 = vld [vmem:[%s196] sm:$0x3f]
        %v795 = vcombine.high %v793, %v793
        %v797 = vunpack.c.l.s4 1983009808
        %v798 = vunpack.c.0.s8 %v797
        %v799 = vlaneseq
        %v800 = vshrl.u32 %v799, 7
        %v801 = vsub.s32 %v798, %v800
        %v802 = vrot.slane %v793, %v801
        %v804 = vunpack.c.l.s4 1983009808
        %v805 = vunpack.c.0.s8 %v804
        %v806 = vlaneseq
        %v807 = vshrl.u32 %v806, 7
        %v808 = vsub.s32 %v805, %v807
        %v809 = vrot.slane %v795, %v808
        %v810 = vcombine.high %v802, %v802
        %811 = vrot.lane.b32.xlu0 %v802, 108
        %v812 = vpop.permute.xlu0 %811
        %813 = vrot.lane.b32.xlu0 %v810, 108
        %v814 = vpop.permute.xlu0 %813
        %815 = vrot.lane.b32.xlu0 %v809, 108
        %v816 = vpop.permute.xlu0 %815
        %vm817 = vcmask 883712
        %v818 = vsel %vm817, %v812, %v814
        %v819 = vsel %vm817, %v814, %v816
        %v821 = vsel %vm228, %v792, 0
        %v824 = vsel %vm232, %v818, 0
        %v827 = vsel %vm232, %v819, 0
        %v830 = vsel %vm232, %v816, 0
        %832 = vmatprep.subr.bf16.mxu0 0
        %833 = vmatpush1.bf16.msra.mxu0 0
        %834 = vmatprep.subr.bf16.mxu0 0
        %835 = vmatpush1.bf16.msra.mxu0 0
        %836 = vmatprep.subr.bf16.mxu0 0
        %837 = vmatpush1.bf16.msra.mxu0 0
        %838 = vmatprep.subr.bf16.mxu0 0
        %839 = vmatpush1.bf16.msra.mxu0 0
        %840 = vmatprep.subr.bf16.mxu0 0
        %841 = vmatpush1.bf16.msra.mxu0 0
        %842 = vmatprep.subr.bf16.mxu0 0
        %843 = vmatpush1.bf16.msra.mxu0 0
        %844 = vmatprep.subr.bf16.mxu0 0
        %845 = vmatpush1.bf16.msra.mxu0 0
        %846 = vmatprep.subr.bf16.mxu0 %v827
        %847 = vmatpush1.bf16.msra.mxu0 %v824
        %848 = vmatprep.subr.bf16.mxu0 0
        %849 = vmatpush2.bf16.msra.mxu0 0
        %850 = vmatprep.subr.bf16.mxu0 0
        %851 = vmatpush2.bf16.msra.mxu0 0
        %852 = vmatprep.subr.bf16.mxu0 0
        %853 = vmatpush2.bf16.msra.mxu0 0
        %854 = vmatprep.subr.bf16.mxu0 0
        %855 = vmatpush2.bf16.msra.mxu0 0
        %856 = vmatprep.subr.bf16.mxu0 0
        %857 = vmatpush2.bf16.msra.mxu0 0
        %858 = vmatprep.subr.bf16.mxu0 0
        %859 = vmatpush2.bf16.msra.mxu0 0
        %860 = vmatprep.subr.bf16.mxu0 0
        %861 = vmatpush2.bf16.msra.mxu0 0
        %862 = vmatprep.subr.bf16.mxu0 0
        %863 = vmatpush2.bf16.msra.mxu0 0
        %864 = vmatprep.mubr.bf16.mxu0 0
        %865 = vmatmul.mubr.bf16.gmra.mxu0 %v821
        %v866 = vpop.f32.mrf.mxu0
        %v867 = vadd.f32 0.0, %v866
        %v868 = vpop.f32.mrf.mxu0
        %v869 = vadd.f32 0.0, %v868
        %v870 = vpop.f32.mrf.mxu0
        %v871 = vpop.f32.mrf.mxu0
        %872 = vdwg.mxu0
        %873 = vmatprep.subr.bf16.mxu0 0
        %874 = vmatpush1.bf16.msra.mxu0 0
        %875 = vmatprep.subr.bf16.mxu0 0
        %876 = vmatpush1.bf16.msra.mxu0 0
        %877 = vmatprep.subr.bf16.mxu0 0
        %878 = vmatpush1.bf16.msra.mxu0 0
        %879 = vmatprep.subr.bf16.mxu0 0
        %880 = vmatpush1.bf16.msra.mxu0 0
        %881 = vmatprep.subr.bf16.mxu0 0
        %882 = vmatpush1.bf16.msra.mxu0 0
        %883 = vmatprep.subr.bf16.mxu0 0
        %884 = vmatpush1.bf16.msra.mxu0 0
        %885 = vmatprep.subr.bf16.mxu0 0
        %886 = vmatpush1.bf16.msra.mxu0 0
        %887 = vmatprep.subr.bf16.mxu0 0
        %888 = vmatpush1.bf16.msra.mxu0 %v830
        %889 = vmatprep.subr.bf16.mxu0 0
        %890 = vmatpush2.bf16.msra.mxu0 0
        %891 = vmatprep.subr.bf16.mxu0 0
        %892 = vmatpush2.bf16.msra.mxu0 0
        %893 = vmatprep.subr.bf16.mxu0 0
        %894 = vmatpush2.bf16.msra.mxu0 0
        %895 = vmatprep.subr.bf16.mxu0 0
        %896 = vmatpush2.bf16.msra.mxu0 0
        %897 = vmatprep.subr.bf16.mxu0 0
        %898 = vmatpush2.bf16.msra.mxu0 0
        %899 = vmatprep.subr.bf16.mxu0 0
        %900 = vmatpush2.bf16.msra.mxu0 0
        %901 = vmatprep.subr.bf16.mxu0 0
        %902 = vmatpush2.bf16.msra.mxu0 0
        %903 = vmatprep.subr.bf16.mxu0 0
        %904 = vmatpush2.bf16.msra.mxu0 0
        %905 = vmatprep.mubr.bf16.mxu0 0
        %906 = vmatmul.mubr.bf16.gmra.mxu0 %v821
        %v907 = vpop.f32.mrf.mxu0
        %v908 = vadd.f32 0.0, %v907
        %v909 = vpop.f32.mrf.mxu0
        %v910 = vpop.f32.mrf.mxu0
        %v911 = vpop.f32.mrf.mxu0
        %912 = vdwg.mxu0
        %v913 = vadd.f32 %v788, %v867
        %v914 = vadd.f32 %v789, %v869
        %v915 = vadd.f32 %v790, %v908
        %s916 = scalar_lea.vmem %s1, 24
        %v917 = vld [vmem:[%s916] sm:$0xf]
        %v918 = vld [vmem:[%s196] sm:$0x3f]
        %v920 = vcombine.high %v918, %v918
        %v922 = vunpack.c.l.s4 1983009808
        %v923 = vunpack.c.0.s8 %v922
        %v924 = vlaneseq
        %v925 = vshrl.u32 %v924, 7
        %v926 = vsub.s32 %v923, %v925
        %v927 = vrot.slane %v918, %v926
        %v929 = vunpack.c.l.s4 1983009808
        %v930 = vunpack.c.0.s8 %v929
        %v931 = vlaneseq
        %v932 = vshrl.u32 %v931, 7
        %v933 = vsub.s32 %v930, %v932
        %v934 = vrot.slane %v920, %v933
        %v935 = vcombine.high %v927, %v927
        %936 = vrot.lane.b32.xlu0 %v927, 92
        %v937 = vpop.permute.xlu0 %936
        %938 = vrot.lane.b32.xlu0 %v935, 92
        %v939 = vpop.permute.xlu0 %938
        %940 = vrot.lane.b32.xlu0 %v934, 92
        %v941 = vpop.permute.xlu0 %940
        %vm942 = vcmask 752640
        %v943 = vsel %vm942, %v937, %v939
        %v944 = vsel %vm942, %v939, %v941
        %v946 = vsel %vm228, %v917, 0
        %v949 = vsel %vm232, %v943, 0
        %v952 = vsel %vm232, %v944, 0
        %v955 = vsel %vm232, %v941, 0
        %957 = vmatprep.subr.bf16.mxu0 0
        %958 = vmatpush1.bf16.msra.mxu0 0
        %959 = vmatprep.subr.bf16.mxu0 0
        %960 = vmatpush1.bf16.msra.mxu0 0
        %961 = vmatprep.subr.bf16.mxu0 0
        %962 = vmatpush1.bf16.msra.mxu0 0
        %963 = vmatprep.subr.bf16.mxu0 0
        %964 = vmatpush1.bf16.msra.mxu0 0
        %965 = vmatprep.subr.bf16.mxu0 0
        %966 = vmatpush1.bf16.msra.mxu0 0
        %967 = vmatprep.subr.bf16.mxu0 0
        %968 = vmatpush1.bf16.msra.mxu0 0
        %969 = vmatprep.subr.bf16.mxu0 0
        %970 = vmatpush1.bf16.msra.mxu0 0
        %971 = vmatprep.subr.bf16.mxu0 %v952
        %972 = vmatpush1.bf16.msra.mxu0 %v949
        %973 = vmatprep.subr.bf16.mxu0 0
        %974 = vmatpush2.bf16.msra.mxu0 0
        %975 = vmatprep.subr.bf16.mxu0 0
        %976 = vmatpush2.bf16.msra.mxu0 0
        %977 = vmatprep.subr.bf16.mxu0 0
        %978 = vmatpush2.bf16.msra.mxu0 0
        %979 = vmatprep.subr.bf16.mxu0 0
        %980 = vmatpush2.bf16.msra.mxu0 0
        %981 = vmatprep.subr.bf16.mxu0 0
        %982 = vmatpush2.bf16.msra.mxu0 0
        %983 = vmatprep.subr.bf16.mxu0 0
        %984 = vmatpush2.bf16.msra.mxu0 0
        %985 = vmatprep.subr.bf16.mxu0 0
        %986 = vmatpush2.bf16.msra.mxu0 0
        %987 = vmatprep.subr.bf16.mxu0 0
        %988 = vmatpush2.bf16.msra.mxu0 0
        %989 = vmatprep.mubr.bf16.mxu0 0
        %990 = vmatmul.mubr.bf16.gmra.mxu0 %v946
        %v991 = vpop.f32.mrf.mxu0
        %v992 = vadd.f32 0.0, %v991
        %v993 = vpop.f32.mrf.mxu0
        %v994 = vadd.f32 0.0, %v993
        %v995 = vpop.f32.mrf.mxu0
        %v996 = vpop.f32.mrf.mxu0
        %997 = vdwg.mxu0
        %998 = vmatprep.subr.bf16.mxu0 0
        %999 = vmatpush1.bf16.msra.mxu0 0
        %1000 = vmatprep.subr.bf16.mxu0 0
        %1001 = vmatpush1.bf16.msra.mxu0 0
        %1002 = vmatprep.subr.bf16.mxu0 0
        %1003 = vmatpush1.bf16.msra.mxu0 0
        %1004 = vmatprep.subr.bf16.mxu0 0
        %1005 = vmatpush1.bf16.msra.mxu0 0
        %1006 = vmatprep.subr.bf16.mxu0 0
        %1007 = vmatpush1.bf16.msra.mxu0 0
        %1008 = vmatprep.subr.bf16.mxu0 0
        %1009 = vmatpush1.bf16.msra.mxu0 0
        %1010 = vmatprep.subr.bf16.mxu0 0
        %1011 = vmatpush1.bf16.msra.mxu0 0
        %1012 = vmatprep.subr.bf16.mxu0 0
        %1013 = vmatpush1.bf16.msra.mxu0 %v955
        %1014 = vmatprep.subr.bf16.mxu0 0
        %1015 = vmatpush2.bf16.msra.mxu0 0
        %1016 = vmatprep.subr.bf16.mxu0 0
        %1017 = vmatpush2.bf16.msra.mxu0 0
        %1018 = vmatprep.subr.bf16.mxu0 0
        %1019 = vmatpush2.bf16.msra.mxu0 0
        %1020 = vmatprep.subr.bf16.mxu0 0
        %1021 = vmatpush2.bf16.msra.mxu0 0
        %1022 = vmatprep.subr.bf16.mxu0 0
        %1023 = vmatpush2.bf16.msra.mxu0 0
        %1024 = vmatprep.subr.bf16.mxu0 0
        %1025 = vmatpush2.bf16.msra.mxu0 0
        %1026 = vmatprep.subr.bf16.mxu0 0
        %1027 = vmatpush2.bf16.msra.mxu0 0
        %1028 = vmatprep.subr.bf16.mxu0 0
        %1029 = vmatpush2.bf16.msra.mxu0 0
        %1030 = vmatprep.mubr.bf16.mxu0 0
        %1031 = vmatmul.mubr.bf16.gmra.mxu0 %v946
        %v1032 = vpop.f32.mrf.mxu0
        %v1033 = vadd.f32 0.0, %v1032
        %v1034 = vpop.f32.mrf.mxu0
        %v1035 = vpop.f32.mrf.mxu0
        %v1036 = vpop.f32.mrf.mxu0
        %1037 = vdwg.mxu0
        %v1038 = vadd.f32 %v913, %v992
        %v1039 = vadd.f32 %v914, %v994
        %v1040 = vadd.f32 %v915, %v1033
        %s1041 = scalar_lea.vmem %s1, 28
        %v1042 = vld [vmem:[%s1041] sm:$0xf]
        %v1043 = vld [vmem:[%s196] sm:$0x3f]
        %v1045 = vcombine.high %v1043, %v1043
        %v1047 = vunpack.c.l.s4 1983009808
        %v1048 = vunpack.c.0.s8 %v1047
        %v1049 = vlaneseq
        %v1050 = vshrl.u32 %v1049, 7
        %v1051 = vsub.s32 %v1048, %v1050
        %v1052 = vrot.slane %v1043, %v1051
        %v1054 = vunpack.c.l.s4 1983009808
        %v1055 = vunpack.c.0.s8 %v1054
        %v1056 = vlaneseq
        %v1057 = vshrl.u32 %v1056, 7
        %v1058 = vsub.s32 %v1055, %v1057
        %v1059 = vrot.slane %v1045, %v1058
        %v1060 = vcombine.high %v1052, %v1052
        %1061 = vrot.lane.b32.xlu0 %v1052, 91
        %v1062 = vpop.permute.xlu0 %1061
        %1063 = vrot.lane.b32.xlu0 %v1060, 91
        %v1064 = vpop.permute.xlu0 %1063
        %1065 = vrot.lane.b32.xlu0 %v1059, 91
        %v1066 = vpop.permute.xlu0 %1065
        %vm1067 = vcmask 744448
        %v1068 = vsel %vm1067, %v1062, %v1064
        %v1069 = vsel %vm1067, %v1064, %v1066
        %v1071 = vsel %vm228, %v1042, 0
        %v1074 = vsel %vm232, %v1068, 0
        %v1077 = vsel %vm232, %v1069, 0
        %v1080 = vsel %vm232, %v1066, 0
        %1082 = vmatprep.subr.bf16.mxu0 0
        %1083 = vmatpush1.bf16.msra.mxu0 0
        %1084 = vmatprep.subr.bf16.mxu0 0
        %1085 = vmatpush1.bf16.msra.mxu0 0
        %1086 = vmatprep.subr.bf16.mxu0 0
        %1087 = vmatpush1.bf16.msra.mxu0 0
        %1088 = vmatprep.subr.bf16.mxu0 0
        %1089 = vmatpush1.bf16.msra.mxu0 0
        %1090 = vmatprep.subr.bf16.mxu0 0
        %1091 = vmatpush1.bf16.msra.mxu0 0
        %1092 = vmatprep.subr.bf16.mxu0 0
        %1093 = vmatpush1.bf16.msra.mxu0 0
        %1094 = vmatprep.subr.bf16.mxu0 0
        %1095 = vmatpush1.bf16.msra.mxu0 0
        %1096 = vmatprep.subr.bf16.mxu0 %v1077
        %1097 = vmatpush1.bf16.msra.mxu0 %v1074
        %1098 = vmatprep.subr.bf16.mxu0 0
        %1099 = vmatpush2.bf16.msra.mxu0 0
        %1100 = vmatprep.subr.bf16.mxu0 0
        %1101 = vmatpush2.bf16.msra.mxu0 0
        %1102 = vmatprep.subr.bf16.mxu0 0
        %1103 = vmatpush2.bf16.msra.mxu0 0
        %1104 = vmatprep.subr.bf16.mxu0 0
        %1105 = vmatpush2.bf16.msra.mxu0 0
        %1106 = vmatprep.subr.bf16.mxu0 0
        %1107 = vmatpush2.bf16.msra.mxu0 0
        %1108 = vmatprep.subr.bf16.mxu0 0
        %1109 = vmatpush2.bf16.msra.mxu0 0
        %1110 = vmatprep.subr.bf16.mxu0 0
        %1111 = vmatpush2.bf16.msra.mxu0 0
        %1112 = vmatprep.subr.bf16.mxu0 0
        %1113 = vmatpush2.bf16.msra.mxu0 0
        %1114 = vmatprep.mubr.bf16.mxu0 0
        %1115 = vmatmul.mubr.bf16.gmra.mxu0 %v1071
        %v1116 = vpop.f32.mrf.mxu0
        %v1117 = vadd.f32 0.0, %v1116
        %v1118 = vpop.f32.mrf.mxu0
        %v1119 = vadd.f32 0.0, %v1118
        %v1120 = vpop.f32.mrf.mxu0
        %v1121 = vpop.f32.mrf.mxu0
        %1122 = vdwg.mxu0
        %1123 = vmatprep.subr.bf16.mxu0 0
        %1124 = vmatpush1.bf16.msra.mxu0 0
        %1125 = vmatprep.subr.bf16.mxu0 0
        %1126 = vmatpush1.bf16.msra.mxu0 0
        %1127 = vmatprep.subr.bf16.mxu0 0
        %1128 = vmatpush1.bf16.msra.mxu0 0
        %1129 = vmatprep.subr.bf16.mxu0 0
        %1130 = vmatpush1.bf16.msra.mxu0 0
        %1131 = vmatprep.subr.bf16.mxu0 0
        %1132 = vmatpush1.bf16.msra.mxu0 0
        %1133 = vmatprep.subr.bf16.mxu0 0
        %1134 = vmatpush1.bf16.msra.mxu0 0
        %1135 = vmatprep.subr.bf16.mxu0 0
        %1136 = vmatpush1.bf16.msra.mxu0 0
        %1137 = vmatprep.subr.bf16.mxu0 0
        %1138 = vmatpush1.bf16.msra.mxu0 %v1080
        %1139 = vmatprep.subr.bf16.mxu0 0
        %1140 = vmatpush2.bf16.msra.mxu0 0
        %1141 = vmatprep.subr.bf16.mxu0 0
        %1142 = vmatpush2.bf16.msra.mxu0 0
        %1143 = vmatprep.subr.bf16.mxu0 0
        %1144 = vmatpush2.bf16.msra.mxu0 0
        %1145 = vmatprep.subr.bf16.mxu0 0
        %1146 = vmatpush2.bf16.msra.mxu0 0
        %1147 = vmatprep.subr.bf16.mxu0 0
        %1148 = vmatpush2.bf16.msra.mxu0 0
        %1149 = vmatprep.subr.bf16.mxu0 0
        %1150 = vmatpush2.bf16.msra.mxu0 0
        %1151 = vmatprep.subr.bf16.mxu0 0
        %1152 = vmatpush2.bf16.msra.mxu0 0
        %1153 = vmatprep.subr.bf16.mxu0 0
        %1154 = vmatpush2.bf16.msra.mxu0 0
        %1155 = vmatprep.mubr.bf16.mxu0 0
        %1156 = vmatmul.mubr.bf16.gmra.mxu0 %v1071
        %v1157 = vpop.f32.mrf.mxu0
        %v1158 = vadd.f32 0.0, %v1157
        %v1159 = vpop.f32.mrf.mxu0
        %v1160 = vpop.f32.mrf.mxu0
        %v1161 = vpop.f32.mrf.mxu0
        %1162 = vdwg.mxu0
        %v1163 = vadd.f32 %v1038, %v1117
        %v1164 = vadd.f32 %v1039, %v1119
        %v1165 = vadd.f32 %v1040, %v1158
        %s1166 = scalar_lea.vmem %s1, 32
        %v1167 = vld [vmem:[%s1166] sm:$0xf]
        %v1168 = vld [vmem:[%s196] sm:$0x3f]
        %v1170 = vcombine.high %v1168, %v1168
        %v1172 = vunpack.c.l.s4 1983009808
        %v1173 = vunpack.c.0.s8 %v1172
        %v1174 = vlaneseq
        %v1175 = vshrl.u32 %v1174, 7
        %v1176 = vsub.s32 %v1173, %v1175
        %v1177 = vrot.slane %v1168, %v1176
        %v1179 = vunpack.c.l.s4 1983009808
        %v1180 = vunpack.c.0.s8 %v1179
        %v1181 = vlaneseq
        %v1182 = vshrl.u32 %v1181, 7
        %v1183 = vsub.s32 %v1180, %v1182
        %v1184 = vrot.slane %v1170, %v1183
        %v1185 = vcombine.high %v1177, %v1177
        %1186 = vrot.lane.b32.xlu0 %v1177, 90
        %v1187 = vpop.permute.xlu0 %1186
        %1188 = vrot.lane.b32.xlu0 %v1185, 90
        %v1189 = vpop.permute.xlu0 %1188
        %1190 = vrot.lane.b32.xlu0 %v1184, 90
        %v1191 = vpop.permute.xlu0 %1190
        %vm1192 = vcmask 736256
        %v1193 = vsel %vm1192, %v1187, %v1189
        %v1194 = vsel %vm1192, %v1189, %v1191
        %v1196 = vsel %vm228, %v1167, 0
        %v1199 = vsel %vm232, %v1193, 0
        %v1202 = vsel %vm232, %v1194, 0
        %v1205 = vsel %vm232, %v1191, 0
        %1207 = vmatprep.subr.bf16.mxu0 0
        %1208 = vmatpush1.bf16.msra.mxu0 0
        %1209 = vmatprep.subr.bf16.mxu0 0
        %1210 = vmatpush1.bf16.msra.mxu0 0
        %1211 = vmatprep.subr.bf16.mxu0 0
        %1212 = vmatpush1.bf16.msra.mxu0 0
        %1213 = vmatprep.subr.bf16.mxu0 0
        %1214 = vmatpush1.bf16.msra.mxu0 0
        %1215 = vmatprep.subr.bf16.mxu0 0
        %1216 = vmatpush1.bf16.msra.mxu0 0
        %1217 = vmatprep.subr.bf16.mxu0 0
        %1218 = vmatpush1.bf16.msra.mxu0 0
        %1219 = vmatprep.subr.bf16.mxu0 0
        %1220 = vmatpush1.bf16.msra.mxu0 0
        %1221 = vmatprep.subr.bf16.mxu0 %v1202
        %1222 = vmatpush1.bf16.msra.mxu0 %v1199
        %1223 = vmatprep.subr.bf16.mxu0 0
        %1224 = vmatpush2.bf16.msra.mxu0 0
        %1225 = vmatprep.subr.bf16.mxu0 0
        %1226 = vmatpush2.bf16.msra.mxu0 0
        %1227 = vmatprep.subr.bf16.mxu0 0
        %1228 = vmatpush2.bf16.msra.mxu0 0
        %1229 = vmatprep.subr.bf16.mxu0 0
        %1230 = vmatpush2.bf16.msra.mxu0 0
        %1231 = vmatprep.subr.bf16.mxu0 0
        %1232 = vmatpush2.bf16.msra.mxu0 0
        %1233 = vmatprep.subr.bf16.mxu0 0
        %1234 = vmatpush2.bf16.msra.mxu0 0
        %1235 = vmatprep.subr.bf16.mxu0 0
        %1236 = vmatpush2.bf16.msra.mxu0 0
        %1237 = vmatprep.subr.bf16.mxu0 0
        %1238 = vmatpush2.bf16.msra.mxu0 0
        %1239 = vmatprep.mubr.bf16.mxu0 0
        %1240 = vmatmul.mubr.bf16.gmra.mxu0 %v1196
        %v1241 = vpop.f32.mrf.mxu0
        %v1242 = vadd.f32 0.0, %v1241
        %v1243 = vpop.f32.mrf.mxu0
        %v1244 = vadd.f32 0.0, %v1243
        %v1245 = vpop.f32.mrf.mxu0
        %v1246 = vpop.f32.mrf.mxu0
        %1247 = vdwg.mxu0
        %1248 = vmatprep.subr.bf16.mxu0 0
        %1249 = vmatpush1.bf16.msra.mxu0 0
        %1250 = vmatprep.subr.bf16.mxu0 0
        %1251 = vmatpush1.bf16.msra.mxu0 0
        %1252 = vmatprep.subr.bf16.mxu0 0
        %1253 = vmatpush1.bf16.msra.mxu0 0
        %1254 = vmatprep.subr.bf16.mxu0 0
        %1255 = vmatpush1.bf16.msra.mxu0 0
        %1256 = vmatprep.subr.bf16.mxu0 0
        %1257 = vmatpush1.bf16.msra.mxu0 0
        %1258 = vmatprep.subr.bf16.mxu0 0
        %1259 = vmatpush1.bf16.msra.mxu0 0
        %1260 = vmatprep.subr.bf16.mxu0 0
        %1261 = vmatpush1.bf16.msra.mxu0 0
        %1262 = vmatprep.subr.bf16.mxu0 0
        %1263 = vmatpush1.bf16.msra.mxu0 %v1205
        %1264 = vmatprep.subr.bf16.mxu0 0
        %1265 = vmatpush2.bf16.msra.mxu0 0
        %1266 = vmatprep.subr.bf16.mxu0 0
        %1267 = vmatpush2.bf16.msra.mxu0 0
        %1268 = vmatprep.subr.bf16.mxu0 0
        %1269 = vmatpush2.bf16.msra.mxu0 0
        %1270 = vmatprep.subr.bf16.mxu0 0
        %1271 = vmatpush2.bf16.msra.mxu0 0
        %1272 = vmatprep.subr.bf16.mxu0 0
        %1273 = vmatpush2.bf16.msra.mxu0 0
        %1274 = vmatprep.subr.bf16.mxu0 0
        %1275 = vmatpush2.bf16.msra.mxu0 0
        %1276 = vmatprep.subr.bf16.mxu0 0
        %1277 = vmatpush2.bf16.msra.mxu0 0
        %1278 = vmatprep.subr.bf16.mxu0 0
        %1279 = vmatpush2.bf16.msra.mxu0 0
        %1280 = vmatprep.mubr.bf16.mxu0 0
        %1281 = vmatmul.mubr.bf16.gmra.mxu0 %v1196
        %v1282 = vpop.f32.mrf.mxu0
        %v1283 = vadd.f32 0.0, %v1282
        %v1284 = vpop.f32.mrf.mxu0
        %v1285 = vpop.f32.mrf.mxu0
        %v1286 = vpop.f32.mrf.mxu0
        %1287 = vdwg.mxu0
        %v1288 = vadd.f32 %v1163, %v1242
        %v1289 = vadd.f32 %v1164, %v1244
        %v1290 = vadd.f32 %v1165, %v1283
        %v1291 = vld [vmem:[%s2] sm:$0xff]
        %1293 = vset.pattern.permute.xlu0 0
        %1294 = vperm.xlu0 %1293, %v1291
        %v1295 = vpop.permute.xlu0 %1294
        %v1297 = vadd.f32 %v1288, %v1295
        %v1298 = vadd.f32 %v1289, %v1295
        %v1299 = vadd.f32 %v1290, %v1295
        %v1300 = vmax.f32 %v1297, 0.0
        %v1301 = vmax.f32 %v1298, 0.0
        %v1302 = vmax.f32 %v1299, 0.0
        %v1303 = vpack.c.bf16 %v1300, %v1300
        %v1304 = vpack.c.bf16 %v1301, %v1301
        %v1305 = vpack.c.bf16 %v1302, %v1302
        %v1309 = vunpack.c.l.b16 %v1303
        %v1310 = vunpack.c.l.b16 %v1304
        %v1311 = vunpack.c.l.b16 %v1305
        %v1312 = vpack.c.b16 %v1310, %v1309
        %v1313 = vpack.c.b16 %v1311, %v1311
        %1316 = vst [vmem:[%s187] sm:$0xff] %v1312
        %vm1317 = vcmask 257024
        %1318 = vst.msk [vmem:[%s187 + $0x8] sm:$0xf] %vm1317, %v1313
        %v1319 = vsub.f32 %v1300, %v1297
        %v1320 = vsub.f32 %v1301, %v1298
        %v1321 = vsub.f32 %v1302, %v1299
        %v1322 = vpack.c.bf16 %v1319, %v1319
        %v1323 = vpack.c.bf16 %v1320, %v1320
        %v1324 = vpack.c.bf16 %v1321, %v1321
        %v1328 = vunpack.c.l.b16 %v1322
        %v1329 = vunpack.c.l.b16 %v1323
        %v1330 = vunpack.c.l.b16 %v1324
        %v1331 = vpack.c.b16 %v1329, %v1328
        %v1332 = vpack.c.b16 %v1330, %v1330
        %1335 = vst [vmem:[%s187 + $0xc] sm:$0xff] %v1331
        %1336 = vst.msk [vmem:[%s187 + $0x14] sm:$0xf] %vm1317, %v1332
        %s1337 = sand.u32 %s109, 1
        %s1338 = scalar_lea.sflag [#allocation3], %s1337
        %s1339 = sand.u32 %s109, 1
        %s1340 = smul.addr %s1339, 24
        %s1341 = scalar_lea.vmem [#allocation2], %s1340
        // Predicated region
        $region33: #{tpu_custom_call.1} parent=31 // pred_check
          %p1342 = pneg %p119
        $region34: #{tpu_custom_call.1} parent=31 // pred_check_branch
          %1344 = sbr.rel (%p1342) target = $region36
        $region35: #{tpu_custom_call.1} parent=31 // pred_region
          %s1346 = ssub.s32 384, 384
          %1347 = vsyncadd %s1338, %s1346
          %s1348 = smul.addr %s22, 6
          %s1349 = smul.addr %s21, 6
          %s1350 = sadd.s32 %s1348, %s1349
          %s1351 = smul.addr %s1350, 64
          %s1352 = scalar_lea.hbm %s3, %s1351
          %s1353 = sshll.u32 %s1341, 4
          %s1354 = int_to_ptr.vmem [resolvable:$true] %s1353
          %1359 = dma.vmem_to_hbm [thread:$0]  %s1354, 384, %s1352, %s1338, 192, 192, 12
        $region36: #{tpu_custom_call.1} parent=31 // pred_fallthru
          _
      $region32: #{tpu_custom_call.1} parent=5 // pred_fallthru
        _
      %p1360 = scmp.le.s32.totalorder 2, %s12
      // Predicated region
      $region37: #{tpu_custom_call.1} parent=5 // pred_check
        %p1361 = pneg %p1360
      $region38: #{tpu_custom_call.1} parent=5 // pred_check_branch
        %1363 = sbr.rel (%p1361) target = $region40
      $region39: #{tpu_custom_call.1} parent=5 // pred_region
        %s1364 = ssub.s32 %s12, 2
        // Predicated region
        $region41: #{tpu_custom_call.1} parent=39 // pred_check
          %p1365 = pneg %p125
        $region42: #{tpu_custom_call.1} parent=39 // pred_check_branch
          %1367 = sbr.rel (%p1365) target = $region44
        $region43: #{tpu_custom_call.1} parent=39 // pred_region
          %s1368 = sand.u32 %s110, 1
          %s1369 = scalar_lea.sflag [#allocation3], %s1368
          %s1370 = sand.u32 %s110, 1
          %s1371 = smul.addr %s1370, 24
          %s1372 = scalar_lea.vmem [#allocation2], %s1371
          %1373 = dma.done %s1369, 384
        $region44: #{tpu_custom_call.1} parent=39 // pred_fallthru
          _
      $region40: #{tpu_custom_call.1} parent=5 // pred_fallthru
        _
    $region6: #{tpu_custom_call.1} parent=1 // loop_footer
      %s16 = sadd.s32 1, %s12
    $region7: #{tpu_custom_call.1} parent=1 // loop_footer_branch
      %11 = sbr.rel target = $region3
    $region8: #{tpu_custom_call.1} parent=1 // loop_exit
      _
    %1374 = vsyncpa [#allocation3], 1
    %s1375 = scalar_lea.sflag [#allocation3], 1
    %1376 = vsyncpa %s1375, 1

</llo_original>
